<compile_context>
chip_gen: v7x
topology: tpu7x:2x2x1
jax: 0.10.0
libtpu: 0.0.40
codegen_flags: <defaults>
</compile_context>

<pallas_src>
import functools

import jax
import jax.numpy as jnp
from jax import lax
from jax.experimental import pallas as pl
from jax.experimental.pallas import tpu as pltpu

LANE = 128


def _round_up(n, m):
    return -(-n // m) * m


# ----------------------------- shared math helpers ----------------------------

def _layer_norm(x, g, b, eps=1e-12):
    mu = jnp.mean(x, axis=-1, keepdims=True)
    var = jnp.mean((x - mu) ** 2, axis=-1, keepdims=True)
    return (x - mu) * lax.rsqrt(var + eps) * g + b


def _gelu(x):
    # TODO(synk): tanh-approximate GELU; PyTorch nn.GELU default is the exact erf
    # form (differences at the ~1e-3 level on logits).
    c = jnp.asarray(0.7978845608028654, x.dtype)  # sqrt(2/pi)
    return 0.5 * x * (1.0 + jnp.tanh(c * (x + 0.044715 * x * x * x)))


# ------------------------------ fused Pallas kernel ----------------------------

def fused_classifier_kernel(x_ref, chs_ref, css_ref,
                            ln1g_ref, ln1b_ref, w1_ref, b1_ref,
                            w2_ref, b2_ref, ln2g_ref, ln2b_ref,
                            wfc_ref, bfc_ref, wcl_ref, bcl_ref,
                            o_ref, h_sc):
    """Grid axis 0 = layer index. h_sc (VMEM scratch) carries the activation."""
    l = pl.program_id(0)
    B, S, H = h_sc.shape

    @pl.when(l == 0)
    def _():
        h_sc[...] = x_ref[...]

    x3 = h_sc[...]                                   # (B, S, H) f32
    x2 = x3.reshape(B * S, H)

    # ---- Fourier mixing: Re(Fs @ X @ Fh) = Cs@X@Ch - Ss@X@Sh ----
    # Step 1 (fused over hidden): [XC | XS] = X @ [Ch | Sh]
    y = jnp.dot(x2.astype(jnp.bfloat16), chs_ref[...],
                preferred_element_type=jnp.float32)  # (B*S, 2H) f32
    y3 = y.reshape(B, S, 2 * H)
    # Step 2 (fused over seq): mix = [Cs | -Ss] @ [XC ; XS]
    stacked = jnp.concatenate([y3[:, :, :H], y3[:, :, H:]], axis=1)  # (B, 2S, H)
    mix = jnp.einsum('st,bth->bsh', css_ref[...], stacked.astype(jnp.bfloat16),
                     preferred_element_type=jnp.float32)             # (B, S, H)

    h1 = _layer_norm(x2 + mix.reshape(B * S, H), ln1g_ref[0], ln1b_ref[0])

    # ---- FFN on flattened (B*S, H) rows ----
    ff = jnp.dot(h1.astype(jnp.bfloat16), w1_ref[0],
                 preferred_element_type=jnp.float32) + b1_ref[0]
    ff = _gelu(ff)
    ff = jnp.dot(ff.astype(jnp.bfloat16), w2_ref[0],
                 preferred_element_type=jnp.float32) + b2_ref[0]

    h2 = _layer_norm(h1 + ff, ln2g_ref[0], ln2b_ref[0])  # (B*S, H) f32
    h_sc[...] = h2.reshape(B, S, H)

    # ---- head (only after the last layer) ----
    @pl.when(l == pl.num_programs(0) - 1)
    def _():
        pooled = jnp.max(h2.reshape(B, S, H), axis=1)    # AdaptiveMaxPool1d(1) -> (B, H)
        z = jnp.dot(pooled.astype(jnp.bfloat16), wfc_ref[...],
                    preferred_element_type=jnp.float32) + bfc_ref[...]
        z = jnp.maximum(z, 0.0)                          # ReLU; dropout = identity (eval)
        o_ref[...] = jnp.dot(z.astype(jnp.bfloat16), wcl_ref[...],
                             preferred_element_type=jnp.float32) + bcl_ref[...]


# ---------------------------------- wrapper ------------------------------------

def run_fused(x, consts, params, cfg):
    B, S, H = x.shape
    F = cfg['ff']
    L = cfg['n_layers']
    n_pad = consts['n_pad']

    per_layer = lambda l: (l, 0, 0)
    const3 = lambda l: (0, 0, 0)
    const2 = lambda l: (0, 0)

    grid_spec = pltpu.PrefetchScalarGridSpec(
        num_scalar_prefetch=0,
        grid=(L,),
        in_specs=[
            pl.BlockSpec((B, S, H), const3),     # x (embedding output)
            pl.BlockSpec((H, 2 * H), const2),    # [Ch | Sh]   (bf16)
            pl.BlockSpec((S, 2 * S), const2),    # [Cs | -Ss]  (bf16)
            pl.BlockSpec((1, 1, H), per_layer),  # ln1 gamma
            pl.BlockSpec((1, 1, H), per_layer),  # ln1 beta
            pl.BlockSpec((1, H, F), per_layer),  # FFN W1 (bf16)
            pl.BlockSpec((1, 1, F), per_layer),  # FFN b1
            pl.BlockSpec((1, F, H), per_layer),  # FFN W2 (bf16)
            pl.BlockSpec((1, 1, H), per_layer),  # FFN b2
            pl.BlockSpec((1, 1, H), per_layer),  # ln2 gamma
            pl.BlockSpec((1, 1, H), per_layer),  # ln2 beta
            pl.BlockSpec((H, H), const2),        # fc W (bf16)
            pl.BlockSpec((1, H), const2),        # fc b
            pl.BlockSpec((H, n_pad), const2),    # classifier W, lane-padded (bf16)
            pl.BlockSpec((1, n_pad), const2),    # classifier b, lane-padded
        ],
        out_specs=pl.BlockSpec((B, n_pad), const2),
        scratch_shapes=[pltpu.VMEM((B, S, H), jnp.float32)],
    )

    return pl.pallas_call(
        fused_classifier_kernel,
        out_shape=jax.ShapeDtypeStruct((B, n_pad), jnp.float32),
        grid_spec=grid_spec,
        compiler_params=pltpu.CompilerParams(
            dimension_semantics=("arbitrary",)),  # layer axis carries state in scratch
    )(x,
      consts['chs'], consts['css'],
      params['ln1g'], params['ln1b'], params['w1'], params['b1'],
      params['w2'], params['b2'], params['ln2g'], params['ln2b'],
      params['w_fc'], params['b_fc'], params['w_cls_pad'], params['b_cls_pad'])


def classifier_forward(params, consts, cfg, input_ids, segment_ids, input_mask):
    S = input_ids.shape[1]
    # ---- embeddings (gathers kept as plain-JAX glue) ----
    e = (params['tok_emb'][input_ids]
         + params['pos_emb'][jnp.arange(S)][None, :, :]
         + params['seg_emb'][segment_ids])
    e = _layer_norm(e, params['emb_ln_g'], params['emb_ln_b'])
    x = (e * input_mask[..., None]).astype(jnp.float32)   # FNet-style masking

    logits_pad = run_fused(x, consts, params, cfg)
    return logits_pad[:, :cfg['n_labels']]


# ----------------------- constants & parameter construction --------------------

def _dft_real_pair(n):
    k = jnp.arange(n, dtype=jnp.float32)
    ang = 2.0 * jnp.pi * jnp.outer(k, k) / n
    return jnp.cos(ang), jnp.sin(ang)


def build_constants(cfg):
    S, H = cfg['max_len'], cfg['hidden']
    cs, ss = _dft_real_pair(S)
    ch, sh = _dft_real_pair(H)
    return dict(
        chs=jnp.concatenate([ch, sh], axis=1).astype(jnp.bfloat16),    # (H, 2H)
        css=jnp.concatenate([cs, -ss], axis=1).astype(jnp.bfloat16),   # (S, 2S)
        n_pad=_round_up(cfg['n_labels'], LANE),
    )


def init_params(key, cfg):
    H, F, V = cfg['hidden'], cfg['ff'], cfg['vocab']
    S, L, n_labels = cfg['max_len'], cfg['n_layers'], cfg['n_labels']
    n_pad = _round_up(n_labels, LANE)
    ks = jax.random.split(key, 5 + 2 * L)
    scale = 0.02

    def nrm(k, shape):
        return scale * jax.random.normal(k, shape, dtype=jnp.float32)

    w_cls = nrm(ks[3], (H, n_labels))
    w_cls_pad = jnp.zeros((H, n_pad), jnp.float32).at[:, :n_labels].set(w_cls)

    return dict(
        tok_emb=nrm(ks[0], (V, H)),
        pos_emb=nrm(ks[1], (S, H)),
        seg_emb=nrm(ks[2], (2, H)),
        emb_ln_g=jnp.ones((1, 1, H), jnp.float32),
        emb_ln_b=jnp.zeros((1, 1, H), jnp.float32),
        w_fc=nrm(ks[4], (H, H)).astype(jnp.bfloat16),
        b_fc=jnp.zeros((1, H), jnp.float32),
        w_cls_pad=w_cls_pad.astype(jnp.bfloat16),
        b_cls_pad=jnp.zeros((1, n_pad), jnp.float32),
        # per-layer weights stacked along a leading layer axis
        ln1g=jnp.ones((L, 1, H), jnp.float32),
        ln1b=jnp.zeros((L, 1, H), jnp.float32),
        w1=jnp.stack([nrm(ks[5 + 2 * i], (H, F)) for i in range(L)]).astype(jnp.bfloat16),
        b1=jnp.zeros((L, 1, F), jnp.float32),
        w2=jnp.stack([nrm(ks[6 + 2 * i], (F, H)) for i in range(L)]).astype(jnp.bfloat16),
        b2=jnp.zeros((L, 1, H), jnp.float32),
        ln2g=jnp.ones((L, 1, H), jnp.float32),
        ln2b=jnp.zeros((L, 1, H), jnp.float32),
    )


# ------------------------------------ main --------------------------------------

if __name__ == "__main__":
    cfg = dict(hidden=32, ff=64, n_layers=2, vocab=50, max_len=8,
               n_labels=3, p_drop_hidden=0.1)   # dropout unused in eval
    B, S = 2, cfg['max_len']

    key = jax.random.PRNGKey(0)
    k_p, k_ids, k_seg = jax.random.split(key, 3)

    params = init_params(k_p, cfg)
    consts = build_constants(cfg)   # hoisted out of the per-call path

    input_ids = jax.random.randint(k_ids, (B, S), 0, cfg['vocab'], dtype=jnp.int32)
    segment_ids = jax.random.randint(k_seg, (B, S), 0, 2, dtype=jnp.int32)
    input_mask = jnp.ones((B, S), dtype=jnp.float32)

    fwd = jax.jit(functools.partial(classifier_forward, params, consts, cfg))
    logits = fwd(input_ids, segment_ids, input_mask)
    jax.block_until_ready(logits)
    assert logits.shape == (B, cfg['n_labels'])
    print("KERNEL_OK")
</pallas_src>

<mosaic_0001>
module attributes {stable_mosaic.version = 11 : i64} {
  func.func @fused_classifier_kernel(%arg0: i32, %arg1: memref<2x8x32xf32, #tpu.memory_space<vmem>>, %arg2: memref<32x64xbf16, #tpu.memory_space<vmem>>, %arg3: memref<8x16xbf16, #tpu.memory_space<vmem>>, %arg4: memref<1x1x32xf32, #tpu.memory_space<vmem>>, %arg5: memref<1x1x32xf32, #tpu.memory_space<vmem>>, %arg6: memref<1x32x64xbf16, #tpu.memory_space<vmem>>, %arg7: memref<1x1x64xf32, #tpu.memory_space<vmem>>, %arg8: memref<1x64x32xbf16, #tpu.memory_space<vmem>>, %arg9: memref<1x1x32xf32, #tpu.memory_space<vmem>>, %arg10: memref<1x1x32xf32, #tpu.memory_space<vmem>>, %arg11: memref<1x1x32xf32, #tpu.memory_space<vmem>>, %arg12: memref<32x32xbf16, #tpu.memory_space<vmem>>, %arg13: memref<1x32xf32, #tpu.memory_space<vmem>>, %arg14: memref<32x128xbf16, #tpu.memory_space<vmem>>, %arg15: memref<1x128xf32, #tpu.memory_space<vmem>>, %arg16: memref<2x128xf32, #tpu.memory_space<vmem>>, %arg17: memref<2x8x32xf32, #tpu.memory_space<vmem>>) attributes {dimension_semantics = [#tpu.dimension_semantics<arbitrary>], iteration_bounds = array<i64: 2>, scalar_prefetch = 0 : i64, scratch_operands = 1 : i64, tpu.core_type = #tpu.core_type<tc>, window_params = [{pipeline_mode = #tpu.pipeline_mode<synchronous>, transform_indices = @transform_0, window_bounds = array<i64: 2, 8, 32>}, {pipeline_mode = #tpu.pipeline_mode<synchronous>, transform_indices = @transform_1, window_bounds = array<i64: 32, 64>}, {pipeline_mode = #tpu.pipeline_mode<synchronous>, transform_indices = @transform_2, window_bounds = array<i64: 8, 16>}, {transform_indices = @transform_3, window_bounds = array<i64: 1, 1, 32>}, {transform_indices = @transform_4, window_bounds = array<i64: 1, 1, 32>}, {transform_indices = @transform_5, window_bounds = array<i64: 1, 32, 64>}, {transform_indices = @transform_6, window_bounds = array<i64: 1, 1, 64>}, {transform_indices = @transform_7, window_bounds = array<i64: 1, 64, 32>}, {transform_indices = @transform_8, window_bounds = array<i64: 1, 1, 32>}, {transform_indices = @transform_9, window_bounds = array<i64: 1, 1, 32>}, {transform_indices = @transform_10, window_bounds = array<i64: 1, 1, 32>}, {pipeline_mode = #tpu.pipeline_mode<synchronous>, transform_indices = @transform_11, window_bounds = array<i64: 32, 32>}, {pipeline_mode = #tpu.pipeline_mode<synchronous>, transform_indices = @transform_12, window_bounds = array<i64: 1, 32>}, {pipeline_mode = #tpu.pipeline_mode<synchronous>, transform_indices = @transform_13, window_bounds = array<i64: 32, 128>}, {pipeline_mode = #tpu.pipeline_mode<synchronous>, transform_indices = @transform_14, window_bounds = array<i64: 1, 128>}, {pipeline_mode = #tpu.pipeline_mode<synchronous>, transform_indices = @transform_15, window_bounds = array<i64: 2, 128>}]} {
    %c0_i32 = arith.constant 0 : i32
    %0 = arith.cmpi eq, %arg0, %c0_i32 : i32
    %1 = arith.extui %0 : i1 to i32
    %c0_i32_0 = arith.constant 0 : i32
    %2 = arith.cmpi ne, %1, %c0_i32_0 : i32
    scf.if %2 {
      %c0_52 = arith.constant 0 : index
      %c0_53 = arith.constant 0 : index
      %c0_54 = arith.constant 0 : index
      %105 = vector.load %arg1[%c0_52, %c0_53, %c0_54] : memref<2x8x32xf32, #tpu.memory_space<vmem>>, vector<2x8x32xf32>
      %c0_55 = arith.constant 0 : index
      %c0_56 = arith.constant 0 : index
      %c0_57 = arith.constant 0 : index
      %106 = vector.load %arg17[%c0_55, %c0_56, %c0_57] : memref<2x8x32xf32, #tpu.memory_space<vmem>>, vector<2x8x32xf32>
      tpu.vector_store %arg17[%c0_55, %c0_56, %c0_57], %105 {strides = array<i32>} : memref<2x8x32xf32, #tpu.memory_space<vmem>>, vector<2x8x32xf32>,
    } else {
    }
    %c0 = arith.constant 0 : index
    %c0_1 = arith.constant 0 : index
    %c0_2 = arith.constant 0 : index
    %3 = vector.load %arg17[%c0, %c0_1, %c0_2] : memref<2x8x32xf32, #tpu.memory_space<vmem>>, vector<2x8x32xf32>
    %4 = vector.shape_cast %3 : vector<2x8x32xf32> to vector<16x32xf32>
    %5 = arith.truncf %4 : vector<16x32xf32> to vector<16x32xbf16>
    %c0_3 = arith.constant 0 : index
    %c0_4 = arith.constant 0 : index
    %6 = vector.load %arg2[%c0_3, %c0_4] : memref<32x64xbf16, #tpu.memory_space<vmem>>, vector<32x64xbf16>
    %cst = arith.constant dense<0.000000e+00> : vector<16x64xf32>
    %7 = tpu.matmul %5, %6, %cst {dimension_numbers = #tpu.dot_dimension_numbers<[1], [0], [0], [1], [0, 0, 1, 1], [], []>} : vector<16x32xbf16>, vector<32x64xbf16>, vector<16x64xf32> -> vector<16x64xf32>
    %8 = vector.shape_cast %7 : vector<16x64xf32> to vector<2x8x64xf32>
    %9 = vector.extract_strided_slice %8 {offsets = [0, 0, 0], sizes = [2, 8, 32], strides = [1, 1, 1]} : vector<2x8x64xf32> to vector<2x8x32xf32>
    %10 = vector.extract_strided_slice %8 {offsets = [0, 0, 32], sizes = [2, 8, 32], strides = [1, 1, 1]} : vector<2x8x64xf32> to vector<2x8x32xf32>
    %11 = tpu.concatenate %9, %10 in 1 : vector<2x8x32xf32>, vector<2x8x32xf32> -> vector<2x16x32xf32>
    %c0_5 = arith.constant 0 : index
    %c0_6 = arith.constant 0 : index
    %12 = vector.load %arg3[%c0_5, %c0_6] : memref<8x16xbf16, #tpu.memory_space<vmem>>, vector<8x16xbf16>
    %13 = arith.truncf %11 : vector<2x16x32xf32> to vector<2x16x32xbf16>
    "tpu.trace_start"() <{level = 10 : i32, message = "st,bth->bsh"}> : () -> ()
    %cst_7 = arith.constant dense<0.000000e+00> : vector<2x32x8xf32>
    %14 = tpu.matmul %13, %12, %cst_7 {dimension_numbers = #tpu.dot_dimension_numbers<[1], [1], [0, 2], [0], [0, 0, 0, 2, 1, 0], [], []>} : vector<2x16x32xbf16>, vector<8x16xbf16>, vector<2x32x8xf32> -> vector<2x32x8xf32>
    %15 = tpu.transpose %14, [0, 2, 1] : vector<2x32x8xf32> -> vector<2x8x32xf32>
    "tpu.trace_stop"() : () -> ()
    %16 = vector.shape_cast %15 : vector<2x8x32xf32> to vector<16x32xf32>
    %17 = arith.addf %4, %16 : vector<16x32xf32>
    %c0_8 = arith.constant 0 : index
    %c0_9 = arith.constant 0 : index
    %c0_10 = arith.constant 0 : index
    %18 = vector.load %arg4[%c0_8, %c0_9, %c0_10] : memref<1x1x32xf32, #tpu.memory_space<vmem>>, vector<1x1x32xf32>
    %19 = vector.shape_cast %18 : vector<1x1x32xf32> to vector<1x32xf32>
    %c0_11 = arith.constant 0 : index
    %c0_12 = arith.constant 0 : index
    %c0_13 = arith.constant 0 : index
    %20 = vector.load %arg5[%c0_11, %c0_12, %c0_13] : memref<1x1x32xf32, #tpu.memory_space<vmem>>, vector<1x1x32xf32>
    %21 = vector.shape_cast %20 : vector<1x1x32xf32> to vector<1x32xf32>
    %cst_14 = arith.constant dense<0.000000e+00> : vector<16xf32>
    %22 = vector.multi_reduction <add>, %17, %cst_14 [1] : vector<16x32xf32> to vector<16xf32>
    %23 = vector.shape_cast %22 : vector<16xf32> to vector<16x1xf32>
    %cst_15 = arith.constant 3.200000e+01 : f32
    %24 = vector.broadcast %cst_15 : f32 to vector<16x1xf32>
    %25 = arith.divf %23, %24 : vector<16x1xf32>
    %26 = vector.broadcast %25 : vector<16x1xf32> to vector<16x32xf32>
    %27 = arith.subf %17, %26 : vector<16x32xf32>
    %28 = arith.mulf %27, %27 : vector<16x32xf32>
    %cst_16 = arith.constant dense<0.000000e+00> : vector<16xf32>
    %29 = vector.multi_reduction <add>, %28, %cst_16 [1] : vector<16x32xf32> to vector<16xf32>
    %30 = vector.shape_cast %29 : vector<16xf32> to vector<16x1xf32>
    %cst_17 = arith.constant 3.200000e+01 : f32
    %31 = vector.broadcast %cst_17 : f32 to vector<16x1xf32>
    %32 = arith.divf %30, %31 : vector<16x1xf32>
    %33 = vector.broadcast %25 : vector<16x1xf32> to vector<16x32xf32>
    %34 = arith.subf %17, %33 : vector<16x32xf32>
    %cst_18 = arith.constant 9.99999996E-13 : f32
    %35 = vector.broadcast %cst_18 : f32 to vector<16x1xf32>
    %36 = arith.addf %32, %35 : vector<16x1xf32>
    %37 = math.rsqrt %36 : vector<16x1xf32>
    %38 = vector.broadcast %37 : vector<16x1xf32> to vector<16x32xf32>
    %39 = arith.mulf %34, %38 : vector<16x32xf32>
    %40 = vector.broadcast %19 : vector<1x32xf32> to vector<16x32xf32>
    %41 = arith.mulf %39, %40 : vector<16x32xf32>
    %42 = vector.broadcast %21 : vector<1x32xf32> to vector<16x32xf32>
    %43 = arith.addf %41, %42 : vector<16x32xf32>
    %44 = arith.truncf %43 : vector<16x32xf32> to vector<16x32xbf16>
    %c0_19 = arith.constant 0 : index
    %c0_20 = arith.constant 0 : index
    %c0_21 = arith.constant 0 : index
    %45 = vector.load %arg6[%c0_19, %c0_20, %c0_21] : memref<1x32x64xbf16, #tpu.memory_space<vmem>>, vector<1x32x64xbf16>
    %46 = vector.shape_cast %45 : vector<1x32x64xbf16> to vector<32x64xbf16>
    %cst_22 = arith.constant dense<0.000000e+00> : vector<16x64xf32>
    %47 = tpu.matmul %44, %46, %cst_22 {dimension_numbers = #tpu.dot_dimension_numbers<[1], [0], [0], [1], [0, 0, 1, 1], [], []>} : vector<16x32xbf16>, vector<32x64xbf16>, vector<16x64xf32> -> vector<16x64xf32>
    %c0_23 = arith.constant 0 : index
    %c0_24 = arith.constant 0 : index
    %c0_25 = arith.constant 0 : index
    %48 = vector.load %arg7[%c0_23, %c0_24, %c0_25] : memref<1x1x64xf32, #tpu.memory_space<vmem>>, vector<1x1x64xf32>
    %49 = vector.shape_cast %48 : vector<1x1x64xf32> to vector<1x64xf32>
    %50 = vector.broadcast %49 : vector<1x64xf32> to vector<16x64xf32>
    %51 = arith.addf %47, %50 : vector<16x64xf32>
    %cst_26 = arith.constant 5.000000e-01 : f32
    %52 = vector.broadcast %cst_26 : f32 to vector<16x64xf32>
    %53 = arith.mulf %52, %51 : vector<16x64xf32>
    %cst_27 = arith.constant 4.471500e-02 : f32
    %54 = vector.broadcast %cst_27 : f32 to vector<16x64xf32>
    %55 = arith.mulf %54, %51 : vector<16x64xf32>
    %56 = arith.mulf %55, %51 : vector<16x64xf32>
    %57 = arith.mulf %56, %51 : vector<16x64xf32>
    %58 = arith.addf %51, %57 : vector<16x64xf32>
    %cst_28 = arith.constant 0.797884583 : f32
    %59 = vector.broadcast %cst_28 : f32 to vector<16x64xf32>
    %60 = arith.mulf %59, %58 : vector<16x64xf32>
    %61 = math.tanh %60 : vector<16x64xf32>
    %cst_29 = arith.constant 1.000000e+00 : f32
    %62 = vector.broadcast %cst_29 : f32 to vector<16x64xf32>
    %63 = arith.addf %62, %61 : vector<16x64xf32>
    %64 = arith.mulf %53, %63 : vector<16x64xf32>
    %65 = arith.truncf %64 : vector<16x64xf32> to vector<16x64xbf16>
    %c0_30 = arith.constant 0 : index
    %c0_31 = arith.constant 0 : index
    %c0_32 = arith.constant 0 : index
    %66 = vector.load %arg8[%c0_30, %c0_31, %c0_32] : memref<1x64x32xbf16, #tpu.memory_space<vmem>>, vector<1x64x32xbf16>
    %67 = vector.shape_cast %66 : vector<1x64x32xbf16> to vector<64x32xbf16>
    %cst_33 = arith.constant dense<0.000000e+00> : vector<16x32xf32>
    %68 = tpu.matmul %65, %67, %cst_33 {dimension_numbers = #tpu.dot_dimension_numbers<[1], [0], [0], [1], [0, 0, 1, 1], [], []>} : vector<16x64xbf16>, vector<64x32xbf16>, vector<16x32xf32> -> vector<16x32xf32>
    %c0_34 = arith.constant 0 : index
    %c0_35 = arith.constant 0 : index
    %c0_36 = arith.constant 0 : index
    %69 = vector.load %arg9[%c0_34, %c0_35, %c0_36] : memref<1x1x32xf32, #tpu.memory_space<vmem>>, vector<1x1x32xf32>
    %70 = vector.shape_cast %69 : vector<1x1x32xf32> to vector<1x32xf32>
    %71 = vector.broadcast %70 : vector<1x32xf32> to vector<16x32xf32>
    %72 = arith.addf %68, %71 : vector<16x32xf32>
    %73 = arith.addf %43, %72 : vector<16x32xf32>
    %c0_37 = arith.constant 0 : index
    %c0_38 = arith.constant 0 : index
    %c0_39 = arith.constant 0 : index
    %74 = vector.load %arg10[%c0_37, %c0_38, %c0_39] : memref<1x1x32xf32, #tpu.memory_space<vmem>>, vector<1x1x32xf32>
    %75 = vector.shape_cast %74 : vector<1x1x32xf32> to vector<1x32xf32>
    %c0_40 = arith.constant 0 : index
    %c0_41 = arith.constant 0 : index
    %c0_42 = arith.constant 0 : index
    %76 = vector.load %arg11[%c0_40, %c0_41, %c0_42] : memref<1x1x32xf32, #tpu.memory_space<vmem>>, vector<1x1x32xf32>
    %77 = vector.shape_cast %76 : vector<1x1x32xf32> to vector<1x32xf32>
    %cst_43 = arith.constant dense<0.000000e+00> : vector<16xf32>
    %78 = vector.multi_reduction <add>, %73, %cst_43 [1] : vector<16x32xf32> to vector<16xf32>
    %79 = vector.shape_cast %78 : vector<16xf32> to vector<16x1xf32>
    %cst_44 = arith.constant 3.200000e+01 : f32
    %80 = vector.broadcast %cst_44 : f32 to vector<16x1xf32>
    %81 = arith.divf %79, %80 : vector<16x1xf32>
    %82 = vector.broadcast %81 : vector<16x1xf32> to vector<16x32xf32>
    %83 = arith.subf %73, %82 : vector<16x32xf32>
    %84 = arith.mulf %83, %83 : vector<16x32xf32>
    %cst_45 = arith.constant dense<0.000000e+00> : vector<16xf32>
    %85 = vector.multi_reduction <add>, %84, %cst_45 [1] : vector<16x32xf32> to vector<16xf32>
    %86 = vector.shape_cast %85 : vector<16xf32> to vector<16x1xf32>
    %cst_46 = arith.constant 3.200000e+01 : f32
    %87 = vector.broadcast %cst_46 : f32 to vector<16x1xf32>
    %88 = arith.divf %86, %87 : vector<16x1xf32>
    %89 = vector.broadcast %81 : vector<16x1xf32> to vector<16x32xf32>
    %90 = arith.subf %73, %89 : vector<16x32xf32>
    %cst_47 = arith.constant 9.99999996E-13 : f32
    %91 = vector.broadcast %cst_47 : f32 to vector<16x1xf32>
    %92 = arith.addf %88, %91 : vector<16x1xf32>
    %93 = math.rsqrt %92 : vector<16x1xf32>
    %94 = vector.broadcast %93 : vector<16x1xf32> to vector<16x32xf32>
    %95 = arith.mulf %90, %94 : vector<16x32xf32>
    %96 = vector.broadcast %75 : vector<1x32xf32> to vector<16x32xf32>
    %97 = arith.mulf %95, %96 : vector<16x32xf32>
    %98 = vector.broadcast %77 : vector<1x32xf32> to vector<16x32xf32>
    %99 = arith.addf %97, %98 : vector<16x32xf32>
    %100 = vector.shape_cast %99 : vector<16x32xf32> to vector<2x8x32xf32>
    %c0_48 = arith.constant 0 : index
    %c0_49 = arith.constant 0 : index
    %c0_50 = arith.constant 0 : index
    %101 = vector.load %arg17[%c0_48, %c0_49, %c0_50] : memref<2x8x32xf32, #tpu.memory_space<vmem>>, vector<2x8x32xf32>
    tpu.vector_store %arg17[%c0_48, %c0_49, %c0_50], %100 {strides = array<i32>} : memref<2x8x32xf32, #tpu.memory_space<vmem>>, vector<2x8x32xf32>,
    %c1_i32 = arith.constant 1 : i32
    %102 = arith.cmpi eq, %arg0, %c1_i32 : i32
    %103 = arith.extui %102 : i1 to i32
    %c0_i32_51 = arith.constant 0 : i32
    %104 = arith.cmpi ne, %103, %c0_i32_51 : i32
    scf.if %104 {
      %105 = vector.shape_cast %99 : vector<16x32xf32> to vector<2x8x32xf32>
      %cst_52 = arith.constant dense<0xFF800000> : vector<2x32xf32>
      %106 = vector.multi_reduction <maximumf>, %105, %cst_52 [1] : vector<2x8x32xf32> to vector<2x32xf32>
      %107 = arith.truncf %106 : vector<2x32xf32> to vector<2x32xbf16>
      %c0_53 = arith.constant 0 : index
      %c0_54 = arith.constant 0 : index
      %108 = vector.load %arg12[%c0_53, %c0_54] : memref<32x32xbf16, #tpu.memory_space<vmem>>, vector<32x32xbf16>
      %cst_55 = arith.constant dense<0.000000e+00> : vector<2x32xf32>
      %109 = tpu.matmul %107, %108, %cst_55 {dimension_numbers = #tpu.dot_dimension_numbers<[1], [0], [0], [1], [0, 0, 1, 1], [], []>} : vector<2x32xbf16>, vector<32x32xbf16>, vector<2x32xf32> -> vector<2x32xf32>
      %c0_56 = arith.constant 0 : index
      %c0_57 = arith.constant 0 : index
      %110 = vector.load %arg13[%c0_56, %c0_57] : memref<1x32xf32, #tpu.memory_space<vmem>>, vector<1x32xf32>
      %111 = vector.broadcast %110 : vector<1x32xf32> to vector<2x32xf32>
      %112 = arith.addf %109, %111 : vector<2x32xf32>
      %cst_58 = arith.constant 0.000000e+00 : f32
      %113 = vector.broadcast %cst_58 : f32 to vector<2x32xf32>
      %114 = arith.maximumf %112, %113 : vector<2x32xf32>
      %115 = arith.truncf %114 : vector<2x32xf32> to vector<2x32xbf16>
      %c0_59 = arith.constant 0 : index
      %c0_60 = arith.constant 0 : index
      %116 = vector.load %arg14[%c0_59, %c0_60] : memref<32x128xbf16, #tpu.memory_space<vmem>>, vector<32x128xbf16>
      %cst_61 = arith.constant dense<0.000000e+00> : vector<2x128xf32>
      %117 = tpu.matmul %115, %116, %cst_61 {dimension_numbers = #tpu.dot_dimension_numbers<[1], [0], [0], [1], [0, 0, 1, 1], [], []>} : vector<2x32xbf16>, vector<32x128xbf16>, vector<2x128xf32> -> vector<2x128xf32>
      %c0_62 = arith.constant 0 : index
      %c0_63 = arith.constant 0 : index
      %118 = vector.load %arg15[%c0_62, %c0_63] : memref<1x128xf32, #tpu.memory_space<vmem>>, vector<1x128xf32>
      %119 = vector.broadcast %118 : vector<1x128xf32> to vector<2x128xf32>
      %120 = arith.addf %117, %119 : vector<2x128xf32>
      %c0_64 = arith.constant 0 : index
      %c0_65 = arith.constant 0 : index
      %121 = vector.load %arg16[%c0_64, %c0_65] : memref<2x128xf32, #tpu.memory_space<vmem>>, vector<2x128xf32>
      tpu.vector_store %arg16[%c0_64, %c0_65], %120 {strides = array<i32>} : memref<2x128xf32, #tpu.memory_space<vmem>>, vector<2x128xf32>,
    } else {
    }
    return
  }
  func.func @transform_0(%arg0: i32) -> (i32, i32, i32) {
    %c0_i32 = arith.constant 0 : i32
    %c0_i32_0 = arith.constant 0 : i32
    %c0_i32_1 = arith.constant 0 : i32
    %c0_i32_2 = arith.constant 0 : i32
    return %c0_i32, %c0_i32_0, %c0_i32_1 : i32, i32, i32
  }
  func.func @transform_1(%arg0: i32) -> (i32, i32) {
    %c0_i32 = arith.constant 0 : i32
    %c0_i32_0 = arith.constant 0 : i32
    %c0_i32_1 = arith.constant 0 : i32
    return %c0_i32, %c0_i32_0 : i32, i32
  }
  func.func @transform_2(%arg0: i32) -> (i32, i32) {
    %c0_i32 = arith.constant 0 : i32
    %c0_i32_0 = arith.constant 0 : i32
    %c0_i32_1 = arith.constant 0 : i32
    return %c0_i32, %c0_i32_0 : i32, i32
  }
  func.func @transform_3(%arg0: i32) -> (i32, i32, i32) {
    %c0_i32 = arith.constant 0 : i32
    %c0_i32_0 = arith.constant 0 : i32
    %c0_i32_1 = arith.constant 0 : i32
    return %arg0, %c0_i32, %c0_i32_0 : i32, i32, i32
  }
  func.func @transform_4(%arg0: i32) -> (i32, i32, i32) {
    %c0_i32 = arith.constant 0 : i32
    %c0_i32_0 = arith.constant 0 : i32
    %c0_i32_1 = arith.constant 0 : i32
    return %arg0, %c0_i32, %c0_i32_0 : i32, i32, i32
  }
  func.func @transform_5(%arg0: i32) -> (i32, i32, i32) {
    %c0_i32 = arith.constant 0 : i32
    %c0_i32_0 = arith.constant 0 : i32
    %c0_i32_1 = arith.constant 0 : i32
    return %arg0, %c0_i32, %c0_i32_0 : i32, i32, i32
  }
  func.func @transform_6(%arg0: i32) -> (i32, i32, i32) {
    %c0_i32 = arith.constant 0 : i32
    %c0_i32_0 = arith.constant 0 : i32
    %c0_i32_1 = arith.constant 0 : i32
    return %arg0, %c0_i32, %c0_i32_0 : i32, i32, i32
  }
  func.func @transform_7(%arg0: i32) -> (i32, i32, i32) {
    %c0_i32 = arith.constant 0 : i32
    %c0_i32_0 = arith.constant 0 : i32
    %c0_i32_1 = arith.constant 0 : i32
    return %arg0, %c0_i32, %c0_i32_0 : i32, i32, i32
  }
  func.func @transform_8(%arg0: i32) -> (i32, i32, i32) {
    %c0_i32 = arith.constant 0 : i32
    %c0_i32_0 = arith.constant 0 : i32
    %c0_i32_1 = arith.constant 0 : i32
    return %arg0, %c0_i32, %c0_i32_0 : i32, i32, i32
  }
  func.func @transform_9(%arg0: i32) -> (i32, i32, i32) {
    %c0_i32 = arith.constant 0 : i32
    %c0_i32_0 = arith.constant 0 : i32
    %c0_i32_1 = arith.constant 0 : i32
    return %arg0, %c0_i32, %c0_i32_0 : i32, i32, i32
  }
  func.func @transform_10(%arg0: i32) -> (i32, i32, i32) {
    %c0_i32 = arith.constant 0 : i32
    %c0_i32_0 = arith.constant 0 : i32
    %c0_i32_1 = arith.constant 0 : i32
    return %arg0, %c0_i32, %c0_i32_0 : i32, i32, i32
  }
  func.func @transform_11(%arg0: i32) -> (i32, i32) {
    %c0_i32 = arith.constant 0 : i32
    %c0_i32_0 = arith.constant 0 : i32
    %c0_i32_1 = arith.constant 0 : i32
    return %c0_i32, %c0_i32_0 : i32, i32
  }
  func.func @transform_12(%arg0: i32) -> (i32, i32) {
    %c0_i32 = arith.constant 0 : i32
    %c0_i32_0 = arith.constant 0 : i32
    %c0_i32_1 = arith.constant 0 : i32
    return %c0_i32, %c0_i32_0 : i32, i32
  }
  func.func @transform_13(%arg0: i32) -> (i32, i32) {
    %c0_i32 = arith.constant 0 : i32
    %c0_i32_0 = arith.constant 0 : i32
    %c0_i32_1 = arith.constant 0 : i32
    return %c0_i32, %c0_i32_0 : i32, i32
  }
  func.func @transform_14(%arg0: i32) -> (i32, i32) {
    %c0_i32 = arith.constant 0 : i32
    %c0_i32_0 = arith.constant 0 : i32
    %c0_i32_1 = arith.constant 0 : i32
    return %c0_i32, %c0_i32_0 : i32, i32
  }
  func.func @transform_15(%arg0: i32) -> (i32, i32) {
    %c0_i32 = arith.constant 0 : i32
    %c0_i32_0 = arith.constant 0 : i32
    %c0_i32_1 = arith.constant 0 : i32
    return %c0_i32, %c0_i32_0 : i32, i32
  }
}

</mosaic_0001>

<llo_original>
// kernel: classifier_forward.1
$region0: #{classifier_forward.1}
  #allocation0 [shape = 'u32[]', space=smem, size = 0x4, offset = 0x4, fixed_abs, tag = 'smem constant byte address 0x4 - core index']
  #allocation1 [shape = 'u32[144,128]{1,0:T(1,128)}', space=vmem, size = 0x12000, scoped, tag = 'internal scratch']
  #allocation2 [shape = 'f32[2,8,32]{2,1,0:T(8,128)}', space=vmem, size = 0x2000, scoped, tag = 'scratch operand']
  %s0 = inlined_call_operand.vmem [shape: f32[2,8,32], index: 0, kind: input, shape index: {}]
  %s1 = inlined_call_operand.vmem [shape: bf16[32,64], index: 1, kind: input, shape index: {}]
  %s2 = inlined_call_operand.vmem [shape: bf16[8,16], index: 2, kind: input, shape index: {}]
  %s3 = inlined_call_operand.vmem [shape: f32[2,1,32], index: 3, kind: input, shape index: {}, may-alias: {3,9}]
  %s4 = inlined_call_operand.vmem [shape: f32[2,1,32], index: 4, kind: input, shape index: {}, may-alias: {4,8,10}]
  %s5 = inlined_call_operand.vmem [shape: bf16[2,32,64], index: 5, kind: input, shape index: {}]
  %s6 = inlined_call_operand.vmem [shape: f32[2,1,64], index: 6, kind: input, shape index: {}]
  %s7 = inlined_call_operand.vmem [shape: bf16[2,64,32], index: 7, kind: input, shape index: {}]
  %s8 = inlined_call_operand.vmem [shape: f32[2,1,32], index: 8, kind: input, shape index: {}, may-alias: {4,8,10}]
  %s9 = inlined_call_operand.vmem [shape: f32[2,1,32], index: 9, kind: input, shape index: {}, may-alias: {3,9}]
  %s10 = inlined_call_operand.vmem [shape: f32[2,1,32], index: 10, kind: input, shape index: {}, may-alias: {4,8,10}]
  %s11 = inlined_call_operand.vmem [shape: bf16[32,32], index: 11, kind: input, shape index: {}]
  %s12 = inlined_call_operand.vmem [shape: f32[1,32], index: 12, kind: input, shape index: {}]
  %s13 = inlined_call_operand.vmem [shape: bf16[32,128], index: 13, kind: input, shape index: {}]
  %s14 = inlined_call_operand.vmem [shape: f32[1,128], index: 14, kind: input, shape index: {}]
  %s15 = inlined_call_operand.hbm [shape: f32[2,128], index: 15, kind: output, shape index: {}]
  %s16 = sld [smem:[#allocation0]]
  $region101: #{classifier_forward.1} parent=0
    _
  %s18 = ssub.s32 1, %s16
  %s19 = scalar_select 0, %s18, %s16
  $region1: #{classifier_forward.1} parent=0
    #allocation3 [shape = 'u8[1024]{0}', space=vmem, size = 0x400, scoped, tag = 'output window, operand 0, single buffered']
    #allocation4 [shape = 's32[2]{0}', space=sflag, size = 0x8, scoped, tag = 'scoped memory for classifier_forward.1']
    %20 = vsyncpa [#allocation4], 0
    loop: start=0, step=1, limit=4
    $region2: #{classifier_forward.1} parent=1 // loop_pre_header
      _
    $region3: #{classifier_forward.1} parent=1 // loop_header
      %s22 = sphi 0, %s26
      %p23 = scmp.ge.s32.totalorder %s22, 4
      %s30 = sphi 0, %s30
      %s32 = sphi 0, %s30
      %s33 = sphi 0, %s32
      %s47 = sphi 0, %s33
      %s51 = sphi 0, %s51
      %s53 = sphi 0, %s51
      %s54 = sphi 0, %s53
      %s68 = sphi 0, %s54
      %s72 = sphi 0, %s72
      %s74 = sphi 0, %s72
      %s75 = sphi 0, %s74
      %s89 = sphi 0, %s75
      %s95 = sphi 0, %s97
      %s98 = sphi 0, %s95
      %s99 = sphi 0, %s98
      %s115 = sphi 0, %s99
      %s121 = sphi 0, %s123
      %s124 = sphi 0, %s121
      %s125 = sphi 0, %s124
      %s141 = sphi 0, %s125
      %s147 = sphi 0, %s149
      %s150 = sphi 0, %s147
      %s151 = sphi 0, %s150
      %s167 = sphi 0, %s151
      %s173 = sphi 0, %s175
      %s176 = sphi 0, %s173
      %s177 = sphi 0, %s176
      %s193 = sphi 0, %s177
      %s199 = sphi 0, %s201
      %s202 = sphi 0, %s199
      %s203 = sphi 0, %s202
      %s219 = sphi 0, %s203
      %s225 = sphi 0, %s227
      %s228 = sphi 0, %s225
      %s229 = sphi 0, %s228
      %s245 = sphi 0, %s229
      %s251 = sphi 0, %s253
      %s254 = sphi 0, %s251
      %s255 = sphi 0, %s254
      %s271 = sphi 0, %s255
      %s277 = sphi 0, %s279
      %s280 = sphi 0, %s277
      %s281 = sphi 0, %s280
      %s297 = sphi 0, %s281
      %s301 = sphi 0, %s301
      %s303 = sphi 0, %s301
      %s304 = sphi 0, %s303
      %s318 = sphi 0, %s304
      %s322 = sphi 0, %s322
      %s324 = sphi 0, %s322
      %s325 = sphi 0, %s324
      %s339 = sphi 0, %s325
      %s343 = sphi 0, %s343
      %s345 = sphi 0, %s343
      %s346 = sphi 0, %s345
      %s360 = sphi 0, %s346
      %s364 = sphi 0, %s364
      %s366 = sphi 0, %s364
      %s367 = sphi 0, %s366
      %s381 = sphi 0, %s367
      %s385 = sphi 0, %s385
      %s387 = sphi 0, %s385
      %s388 = sphi 0, %s387
      %s402 = sphi 0, %s388
    $region4: #{classifier_forward.1} parent=1 // loop_header_branch
      %25 = sbr.rel (%p23) target = $region8
    $region5: #{classifier_forward.1} parent=1 // loop_body
      %s27 = ssub.s32 %s22, 1
      %s28 = ssub.s32 %s22, 2
      %s29 = sadd.s32 %s22, 1
      %s31 = sadd.s32 %s30, 1
      %p34 = scmp.eq.s32.totalorder %s22, 1
      %p35 = scmp.ne.s32.totalorder %s30, %s32
      %p36 = scmp.eq.s32.totalorder %s22, 0
      %p37 = por %p35, %p36
      %p38 = scmp.ne.s32.totalorder %s30, %s32
      %p39 = scmp.eq.s32.totalorder %s27, 1
      %p40 = por %p38, %p39
      %p41 = scmp.ne.s32.totalorder %s32, %s33
      %p42 = scmp.eq.s32.totalorder %s27, 0
      %p43 = por %p41, %p42
      %p44 = scmp.ne.s32.totalorder %s32, %s33
      %p45 = scmp.eq.s32.totalorder %s28, 1
      %p46 = por %p44, %p45
      %p48 = scmp.ne.s32.totalorder %s33, %s47
      %p49 = scmp.eq.s32.totalorder %s28, 0
      %p50 = por %p48, %p49
      %s52 = sadd.s32 %s51, 1
      %p55 = scmp.eq.s32.totalorder %s22, 1
      %p56 = scmp.ne.s32.totalorder %s51, %s53
      %p57 = scmp.eq.s32.totalorder %s22, 0
      %p58 = por %p56, %p57
      %p59 = scmp.ne.s32.totalorder %s51, %s53
      %p60 = scmp.eq.s32.totalorder %s27, 1
      %p61 = por %p59, %p60
      %p62 = scmp.ne.s32.totalorder %s53, %s54
      %p63 = scmp.eq.s32.totalorder %s27, 0
      %p64 = por %p62, %p63
      %p65 = scmp.ne.s32.totalorder %s53, %s54
      %p66 = scmp.eq.s32.totalorder %s28, 1
      %p67 = por %p65, %p66
      %p69 = scmp.ne.s32.totalorder %s54, %s68
      %p70 = scmp.eq.s32.totalorder %s28, 0
      %p71 = por %p69, %p70
      %s73 = sadd.s32 %s72, 1
      %p76 = scmp.eq.s32.totalorder %s22, 1
      %p77 = scmp.ne.s32.totalorder %s72, %s74
      %p78 = scmp.eq.s32.totalorder %s22, 0
      %p79 = por %p77, %p78
      %p80 = scmp.ne.s32.totalorder %s72, %s74
      %p81 = scmp.eq.s32.totalorder %s27, 1
      %p82 = por %p80, %p81
      %p83 = scmp.ne.s32.totalorder %s74, %s75
      %p84 = scmp.eq.s32.totalorder %s27, 0
      %p85 = por %p83, %p84
      %p86 = scmp.ne.s32.totalorder %s74, %s75
      %p87 = scmp.eq.s32.totalorder %s28, 1
      %p88 = por %p86, %p87
      %p90 = scmp.ne.s32.totalorder %s75, %s89
      %p91 = scmp.eq.s32.totalorder %s28, 0
      %p92 = por %p90, %p91
      %s93 = ssub.s32 %s22, %s29
      %p94 = scmp.eq.s32.totalorder %s93, 0
      %s96 = sadd.s32 %s95, 1
      %s97 = scalar_select %p94, %s95, %s96
      %p100 = pneg %p94
      %p101 = scmp.eq.s32.totalorder %s22, 1
      %p102 = por %p100, %p101
      %p103 = scmp.ne.s32.totalorder %s95, %s98
      %p104 = scmp.eq.s32.totalorder %s22, 0
      %p105 = por %p103, %p104
      %p106 = scmp.ne.s32.totalorder %s95, %s98
      %p107 = scmp.eq.s32.totalorder %s27, 1
      %p108 = por %p106, %p107
      %p109 = scmp.ne.s32.totalorder %s98, %s99
      %p110 = scmp.eq.s32.totalorder %s27, 0
      %p111 = por %p109, %p110
      %p112 = scmp.ne.s32.totalorder %s98, %s99
      %p113 = scmp.eq.s32.totalorder %s28, 1
      %p114 = por %p112, %p113
      %p116 = scmp.ne.s32.totalorder %s99, %s115
      %p117 = scmp.eq.s32.totalorder %s28, 0
      %p118 = por %p116, %p117
      %s119 = ssub.s32 %s22, %s29
      %p120 = scmp.eq.s32.totalorder %s119, 0
      %s122 = sadd.s32 %s121, 1
      %s123 = scalar_select %p120, %s121, %s122
      %p126 = pneg %p120
      %p127 = scmp.eq.s32.totalorder %s22, 1
      %p128 = por %p126, %p127
      %p129 = scmp.ne.s32.totalorder %s121, %s124
      %p130 = scmp.eq.s32.totalorder %s22, 0
      %p131 = por %p129, %p130
      %p132 = scmp.ne.s32.totalorder %s121, %s124
      %p133 = scmp.eq.s32.totalorder %s27, 1
      %p134 = por %p132, %p133
      %p135 = scmp.ne.s32.totalorder %s124, %s125
      %p136 = scmp.eq.s32.totalorder %s27, 0
      %p137 = por %p135, %p136
      %p138 = scmp.ne.s32.totalorder %s124, %s125
      %p139 = scmp.eq.s32.totalorder %s28, 1
      %p140 = por %p138, %p139
      %p142 = scmp.ne.s32.totalorder %s125, %s141
      %p143 = scmp.eq.s32.totalorder %s28, 0
      %p144 = por %p142, %p143
      %s145 = ssub.s32 %s22, %s29
      %p146 = scmp.eq.s32.totalorder %s145, 0
      %s148 = sadd.s32 %s147, 1
      %s149 = scalar_select %p146, %s147, %s148
      %p152 = pneg %p146
      %p153 = scmp.eq.s32.totalorder %s22, 1
      %p154 = por %p152, %p153
      %p155 = scmp.ne.s32.totalorder %s147, %s150
      %p156 = scmp.eq.s32.totalorder %s22, 0
      %p157 = por %p155, %p156
      %p158 = scmp.ne.s32.totalorder %s147, %s150
      %p159 = scmp.eq.s32.totalorder %s27, 1
      %p160 = por %p158, %p159
      %p161 = scmp.ne.s32.totalorder %s150, %s151
      %p162 = scmp.eq.s32.totalorder %s27, 0
      %p163 = por %p161, %p162
      %p164 = scmp.ne.s32.totalorder %s150, %s151
      %p165 = scmp.eq.s32.totalorder %s28, 1
      %p166 = por %p164, %p165
      %p168 = scmp.ne.s32.totalorder %s151, %s167
      %p169 = scmp.eq.s32.totalorder %s28, 0
      %p170 = por %p168, %p169
      %s171 = ssub.s32 %s22, %s29
      %p172 = scmp.eq.s32.totalorder %s171, 0
      %s174 = sadd.s32 %s173, 1
      %s175 = scalar_select %p172, %s173, %s174
      %p178 = pneg %p172
      %p179 = scmp.eq.s32.totalorder %s22, 1
      %p180 = por %p178, %p179
      %p181 = scmp.ne.s32.totalorder %s173, %s176
      %p182 = scmp.eq.s32.totalorder %s22, 0
      %p183 = por %p181, %p182
      %p184 = scmp.ne.s32.totalorder %s173, %s176
      %p185 = scmp.eq.s32.totalorder %s27, 1
      %p186 = por %p184, %p185
      %p187 = scmp.ne.s32.totalorder %s176, %s177
      %p188 = scmp.eq.s32.totalorder %s27, 0
      %p189 = por %p187, %p188
      %p190 = scmp.ne.s32.totalorder %s176, %s177
      %p191 = scmp.eq.s32.totalorder %s28, 1
      %p192 = por %p190, %p191
      %p194 = scmp.ne.s32.totalorder %s177, %s193
      %p195 = scmp.eq.s32.totalorder %s28, 0
      %p196 = por %p194, %p195
      %s197 = ssub.s32 %s22, %s29
      %p198 = scmp.eq.s32.totalorder %s197, 0
      %s200 = sadd.s32 %s199, 1
      %s201 = scalar_select %p198, %s199, %s200
      %p204 = pneg %p198
      %p205 = scmp.eq.s32.totalorder %s22, 1
      %p206 = por %p204, %p205
      %p207 = scmp.ne.s32.totalorder %s199, %s202
      %p208 = scmp.eq.s32.totalorder %s22, 0
      %p209 = por %p207, %p208
      %p210 = scmp.ne.s32.totalorder %s199, %s202
      %p211 = scmp.eq.s32.totalorder %s27, 1
      %p212 = por %p210, %p211
      %p213 = scmp.ne.s32.totalorder %s202, %s203
      %p214 = scmp.eq.s32.totalorder %s27, 0
      %p215 = por %p213, %p214
      %p216 = scmp.ne.s32.totalorder %s202, %s203
      %p217 = scmp.eq.s32.totalorder %s28, 1
      %p218 = por %p216, %p217
      %p220 = scmp.ne.s32.totalorder %s203, %s219
      %p221 = scmp.eq.s32.totalorder %s28, 0
      %p222 = por %p220, %p221
      %s223 = ssub.s32 %s22, %s29
      %p224 = scmp.eq.s32.totalorder %s223, 0
      %s226 = sadd.s32 %s225, 1
      %s227 = scalar_select %p224, %s225, %s226
      %p230 = pneg %p224
      %p231 = scmp.eq.s32.totalorder %s22, 1
      %p232 = por %p230, %p231
      %p233 = scmp.ne.s32.totalorder %s225, %s228
      %p234 = scmp.eq.s32.totalorder %s22, 0
      %p235 = por %p233, %p234
      %p236 = scmp.ne.s32.totalorder %s225, %s228
      %p237 = scmp.eq.s32.totalorder %s27, 1
      %p238 = por %p236, %p237
      %p239 = scmp.ne.s32.totalorder %s228, %s229
      %p240 = scmp.eq.s32.totalorder %s27, 0
      %p241 = por %p239, %p240
      %p242 = scmp.ne.s32.totalorder %s228, %s229
      %p243 = scmp.eq.s32.totalorder %s28, 1
      %p244 = por %p242, %p243
      %p246 = scmp.ne.s32.totalorder %s229, %s245
      %p247 = scmp.eq.s32.totalorder %s28, 0
      %p248 = por %p246, %p247
      %s249 = ssub.s32 %s22, %s29
      %p250 = scmp.eq.s32.totalorder %s249, 0
      %s252 = sadd.s32 %s251, 1
      %s253 = scalar_select %p250, %s251, %s252
      %p256 = pneg %p250
      %p257 = scmp.eq.s32.totalorder %s22, 1
      %p258 = por %p256, %p257
      %p259 = scmp.ne.s32.totalorder %s251, %s254
      %p260 = scmp.eq.s32.totalorder %s22, 0
      %p261 = por %p259, %p260
      %p262 = scmp.ne.s32.totalorder %s251, %s254
      %p263 = scmp.eq.s32.totalorder %s27, 1
      %p264 = por %p262, %p263
      %p265 = scmp.ne.s32.totalorder %s254, %s255
      %p266 = scmp.eq.s32.totalorder %s27, 0
      %p267 = por %p265, %p266
      %p268 = scmp.ne.s32.totalorder %s254, %s255
      %p269 = scmp.eq.s32.totalorder %s28, 1
      %p270 = por %p268, %p269
      %p272 = scmp.ne.s32.totalorder %s255, %s271
      %p273 = scmp.eq.s32.totalorder %s28, 0
      %p274 = por %p272, %p273
      %s275 = ssub.s32 %s22, %s29
      %p276 = scmp.eq.s32.totalorder %s275, 0
      %s278 = sadd.s32 %s277, 1
      %s279 = scalar_select %p276, %s277, %s278
      %p282 = pneg %p276
      %p283 = scmp.eq.s32.totalorder %s22, 1
      %p284 = por %p282, %p283
      %p285 = scmp.ne.s32.totalorder %s277, %s280
      %p286 = scmp.eq.s32.totalorder %s22, 0
      %p287 = por %p285, %p286
      %p288 = scmp.ne.s32.totalorder %s277, %s280
      %p289 = scmp.eq.s32.totalorder %s27, 1
      %p290 = por %p288, %p289
      %p291 = scmp.ne.s32.totalorder %s280, %s281
      %p292 = scmp.eq.s32.totalorder %s27, 0
      %p293 = por %p291, %p292
      %p294 = scmp.ne.s32.totalorder %s280, %s281
      %p295 = scmp.eq.s32.totalorder %s28, 1
      %p296 = por %p294, %p295
      %p298 = scmp.ne.s32.totalorder %s281, %s297
      %p299 = scmp.eq.s32.totalorder %s28, 0
      %p300 = por %p298, %p299
      %s302 = sadd.s32 %s301, 1
      %p305 = scmp.eq.s32.totalorder %s22, 1
      %p306 = scmp.ne.s32.totalorder %s301, %s303
      %p307 = scmp.eq.s32.totalorder %s22, 0
      %p308 = por %p306, %p307
      %p309 = scmp.ne.s32.totalorder %s301, %s303
      %p310 = scmp.eq.s32.totalorder %s27, 1
      %p311 = por %p309, %p310
      %p312 = scmp.ne.s32.totalorder %s303, %s304
      %p313 = scmp.eq.s32.totalorder %s27, 0
      %p314 = por %p312, %p313
      %p315 = scmp.ne.s32.totalorder %s303, %s304
      %p316 = scmp.eq.s32.totalorder %s28, 1
      %p317 = por %p315, %p316
      %p319 = scmp.ne.s32.totalorder %s304, %s318
      %p320 = scmp.eq.s32.totalorder %s28, 0
      %p321 = por %p319, %p320
      %s323 = sadd.s32 %s322, 1
      %p326 = scmp.eq.s32.totalorder %s22, 1
      %p327 = scmp.ne.s32.totalorder %s322, %s324
      %p328 = scmp.eq.s32.totalorder %s22, 0
      %p329 = por %p327, %p328
      %p330 = scmp.ne.s32.totalorder %s322, %s324
      %p331 = scmp.eq.s32.totalorder %s27, 1
      %p332 = por %p330, %p331
      %p333 = scmp.ne.s32.totalorder %s324, %s325
      %p334 = scmp.eq.s32.totalorder %s27, 0
      %p335 = por %p333, %p334
      %p336 = scmp.ne.s32.totalorder %s324, %s325
      %p337 = scmp.eq.s32.totalorder %s28, 1
      %p338 = por %p336, %p337
      %p340 = scmp.ne.s32.totalorder %s325, %s339
      %p341 = scmp.eq.s32.totalorder %s28, 0
      %p342 = por %p340, %p341
      %s344 = sadd.s32 %s343, 1
      %p347 = scmp.eq.s32.totalorder %s22, 1
      %p348 = scmp.ne.s32.totalorder %s343, %s345
      %p349 = scmp.eq.s32.totalorder %s22, 0
      %p350 = por %p348, %p349
      %p351 = scmp.ne.s32.totalorder %s343, %s345
      %p352 = scmp.eq.s32.totalorder %s27, 1
      %p353 = por %p351, %p352
      %p354 = scmp.ne.s32.totalorder %s345, %s346
      %p355 = scmp.eq.s32.totalorder %s27, 0
      %p356 = por %p354, %p355
      %p357 = scmp.ne.s32.totalorder %s345, %s346
      %p358 = scmp.eq.s32.totalorder %s28, 1
      %p359 = por %p357, %p358
      %p361 = scmp.ne.s32.totalorder %s346, %s360
      %p362 = scmp.eq.s32.totalorder %s28, 0
      %p363 = por %p361, %p362
      %s365 = sadd.s32 %s364, 1
      %p368 = scmp.eq.s32.totalorder %s22, 1
      %p369 = scmp.ne.s32.totalorder %s364, %s366
      %p370 = scmp.eq.s32.totalorder %s22, 0
      %p371 = por %p369, %p370
      %p372 = scmp.ne.s32.totalorder %s364, %s366
      %p373 = scmp.eq.s32.totalorder %s27, 1
      %p374 = por %p372, %p373
      %p375 = scmp.ne.s32.totalorder %s366, %s367
      %p376 = scmp.eq.s32.totalorder %s27, 0
      %p377 = por %p375, %p376
      %p378 = scmp.ne.s32.totalorder %s366, %s367
      %p379 = scmp.eq.s32.totalorder %s28, 1
      %p380 = por %p378, %p379
      %p382 = scmp.ne.s32.totalorder %s367, %s381
      %p383 = scmp.eq.s32.totalorder %s28, 0
      %p384 = por %p382, %p383
      %s386 = sadd.s32 %s385, 1
      %p389 = scmp.eq.s32.totalorder %s22, 1
      %p390 = scmp.ne.s32.totalorder %s385, %s387
      %p391 = scmp.eq.s32.totalorder %s22, 0
      %p392 = por %p390, %p391
      %p393 = scmp.ne.s32.totalorder %s385, %s387
      %p394 = scmp.eq.s32.totalorder %s27, 1
      %p395 = por %p393, %p394
      %p396 = scmp.ne.s32.totalorder %s387, %s388
      %p397 = scmp.eq.s32.totalorder %s27, 0
      %p398 = por %p396, %p397
      %p399 = scmp.ne.s32.totalorder %s387, %s388
      %p400 = scmp.eq.s32.totalorder %s28, 1
      %p401 = por %p399, %p400
      %p403 = scmp.ne.s32.totalorder %s388, %s402
      %p404 = scmp.eq.s32.totalorder %s28, 0
      %p405 = por %p403, %p404
      %p406 = scmp.le.s32.totalorder 1, %s22
      %p407 = scmp.lt.s32.totalorder %s22, 3
      %p408 = pnand %p406, %p407
      %p409 = pneg %p408
      // Predicated region
      $region9: #{classifier_forward.1} parent=5 // pred_check
        _
      $region10: #{classifier_forward.1} parent=5 // pred_check_branch
        %411 = sbr.rel (%p408) target = $region12
      $region11: #{classifier_forward.1} parent=5 // pred_region
        %s412 = ssub.s32 %s22, 1
        // Predicated region
        $region13: #{classifier_forward.1} parent=11 // pred_check
          %p413 = pneg %p43
        $region14: #{classifier_forward.1} parent=11 // pred_check_branch
          %415 = sbr.rel (%p413) target = $region16
        $region15: #{classifier_forward.1} parent=11 // pred_region
          _
        $region16: #{classifier_forward.1} parent=11 // pred_fallthru
          _
        // Predicated region
        $region17: #{classifier_forward.1} parent=11 // pred_check
          %p416 = pneg %p64
        $region18: #{classifier_forward.1} parent=11 // pred_check_branch
          %418 = sbr.rel (%p416) target = $region20
        $region19: #{classifier_forward.1} parent=11 // pred_region
          _
        $region20: #{classifier_forward.1} parent=11 // pred_fallthru
          _
        // Predicated region
        $region21: #{classifier_forward.1} parent=11 // pred_check
          %p419 = pneg %p85
        $region22: #{classifier_forward.1} parent=11 // pred_check_branch
          %421 = sbr.rel (%p419) target = $region24
        $region23: #{classifier_forward.1} parent=11 // pred_region
          _
        $region24: #{classifier_forward.1} parent=11 // pred_fallthru
          _
        // Predicated region
        $region25: #{classifier_forward.1} parent=11 // pred_check
          %p422 = pneg %p314
        $region26: #{classifier_forward.1} parent=11 // pred_check_branch
          %424 = sbr.rel (%p422) target = $region28
        $region27: #{classifier_forward.1} parent=11 // pred_region
          _
        $region28: #{classifier_forward.1} parent=11 // pred_fallthru
          _
        // Predicated region
        $region29: #{classifier_forward.1} parent=11 // pred_check
          %p425 = pneg %p335
        $region30: #{classifier_forward.1} parent=11 // pred_check_branch
          %427 = sbr.rel (%p425) target = $region32
        $region31: #{classifier_forward.1} parent=11 // pred_region
          _
        $region32: #{classifier_forward.1} parent=11 // pred_fallthru
          _
        // Predicated region
        $region33: #{classifier_forward.1} parent=11 // pred_check
          %p428 = pneg %p356
        $region34: #{classifier_forward.1} parent=11 // pred_check_branch
          %430 = sbr.rel (%p428) target = $region36
        $region35: #{classifier_forward.1} parent=11 // pred_region
          _
        $region36: #{classifier_forward.1} parent=11 // pred_fallthru
          _
        // Predicated region
        $region37: #{classifier_forward.1} parent=11 // pred_check
          %p431 = pneg %p377
        $region38: #{classifier_forward.1} parent=11 // pred_check_branch
          %433 = sbr.rel (%p431) target = $region40
        $region39: #{classifier_forward.1} parent=11 // pred_region
          _
        $region40: #{classifier_forward.1} parent=11 // pred_fallthru
          _
      $region12: #{classifier_forward.1} parent=5 // pred_fallthru
        _
      %p434 = scmp.lt.s32.totalorder %s22, 2
      // Predicated region
      $region41: #{classifier_forward.1} parent=5 // pred_check
        %p435 = pneg %p434
      $region42: #{classifier_forward.1} parent=5 // pred_check_branch
        %437 = sbr.rel (%p435) target = $region44
      $region43: #{classifier_forward.1} parent=5 // pred_region
        // Predicated region
        $region45: #{classifier_forward.1} parent=43 // pred_check
          %p438 = pneg %p105
        $region46: #{classifier_forward.1} parent=43 // pred_check_branch
          %440 = sbr.rel (%p438) target = $region48
        $region47: #{classifier_forward.1} parent=43 // pred_region
          %p441 = scmp.lt.s32.totalorder %s22, 1
          %s442 = scalar_select %p441, %s22, 1
          %s443 = scalar_lea.vmem %s3, %s442
        $region48: #{classifier_forward.1} parent=43 // pred_fallthru
          _
        // Predicated region
        $region49: #{classifier_forward.1} parent=43 // pred_check
          %p444 = pneg %p131
        $region50: #{classifier_forward.1} parent=43 // pred_check_branch
          %446 = sbr.rel (%p444) target = $region52
        $region51: #{classifier_forward.1} parent=43 // pred_region
          %p447 = scmp.lt.s32.totalorder %s22, 1
          %s448 = scalar_select %p447, %s22, 1
          %s449 = scalar_lea.vmem %s4, %s448
        $region52: #{classifier_forward.1} parent=43 // pred_fallthru
          _
        // Predicated region
        $region53: #{classifier_forward.1} parent=43 // pred_check
          %p450 = pneg %p157
        $region54: #{classifier_forward.1} parent=43 // pred_check_branch
          %452 = sbr.rel (%p450) target = $region56
        $region55: #{classifier_forward.1} parent=43 // pred_region
          %p453 = scmp.lt.s32.totalorder %s22, 1
          %s454 = scalar_select %p453, %s22, 1
          %s455 = smul.addr %s454, 4
          %s456 = smul.addr %s455, 4
          %s457 = scalar_lea.vmem %s5, %s456
        $region56: #{classifier_forward.1} parent=43 // pred_fallthru
          _
        // Predicated region
        $region57: #{classifier_forward.1} parent=43 // pred_check
          %p458 = pneg %p183
        $region58: #{classifier_forward.1} parent=43 // pred_check_branch
          %460 = sbr.rel (%p458) target = $region60
        $region59: #{classifier_forward.1} parent=43 // pred_region
          %p461 = scmp.lt.s32.totalorder %s22, 1
          %s462 = scalar_select %p461, %s22, 1
          %s463 = scalar_lea.vmem %s6, %s462
        $region60: #{classifier_forward.1} parent=43 // pred_fallthru
          _
        // Predicated region
        $region61: #{classifier_forward.1} parent=43 // pred_check
          %p464 = pneg %p209
        $region62: #{classifier_forward.1} parent=43 // pred_check_branch
          %466 = sbr.rel (%p464) target = $region64
        $region63: #{classifier_forward.1} parent=43 // pred_region
          %p467 = scmp.lt.s32.totalorder %s22, 1
          %s468 = scalar_select %p467, %s22, 1
          %s469 = smul.addr %s468, 8
          %s470 = smul.addr %s469, 4
          %s471 = scalar_lea.vmem %s7, %s470
        $region64: #{classifier_forward.1} parent=43 // pred_fallthru
          _
        // Predicated region
        $region65: #{classifier_forward.1} parent=43 // pred_check
          %p472 = pneg %p235
        $region66: #{classifier_forward.1} parent=43 // pred_check_branch
          %474 = sbr.rel (%p472) target = $region68
        $region67: #{classifier_forward.1} parent=43 // pred_region
          %p475 = scmp.lt.s32.totalorder %s22, 1
          %s476 = scalar_select %p475, %s22, 1
          %s477 = scalar_lea.vmem %s8, %s476
        $region68: #{classifier_forward.1} parent=43 // pred_fallthru
          _
        // Predicated region
        $region69: #{classifier_forward.1} parent=43 // pred_check
          %p478 = pneg %p261
        $region70: #{classifier_forward.1} parent=43 // pred_check_branch
          %480 = sbr.rel (%p478) target = $region72
        $region71: #{classifier_forward.1} parent=43 // pred_region
          %p481 = scmp.lt.s32.totalorder %s22, 1
          %s482 = scalar_select %p481, %s22, 1
          %s483 = scalar_lea.vmem %s9, %s482
        $region72: #{classifier_forward.1} parent=43 // pred_fallthru
          _
        // Predicated region
        $region73: #{classifier_forward.1} parent=43 // pred_check
          %p484 = pneg %p287
        $region74: #{classifier_forward.1} parent=43 // pred_check_branch
          %486 = sbr.rel (%p484) target = $region76
        $region75: #{classifier_forward.1} parent=43 // pred_region
          %p487 = scmp.lt.s32.totalorder %s22, 1
          %s488 = scalar_select %p487, %s22, 1
          %s489 = scalar_lea.vmem %s10, %s488
        $region76: #{classifier_forward.1} parent=43 // pred_fallthru
          _
      $region44: #{classifier_forward.1} parent=5 // pred_fallthru
        _
      %p490 = scmp.le.s32.totalorder 1, %s22
      %p491 = scmp.lt.s32.totalorder %s22, 3
      %p492 = pnand %p490, %p491
      %p493 = pneg %p492
      // Predicated region
      $region77: #{classifier_forward.1} parent=5 // pred_check
        _
      $region78: #{classifier_forward.1} parent=5 // pred_check_branch
        %495 = sbr.rel (%p492) target = $region80
      $region79: #{classifier_forward.1} parent=5 // pred_region
        %s496 = ssub.s32 %s22, 1
        %p497 = pneg %p43
        %p498 = pneg %p40
        %p499 = pneg %p64
        %p500 = pneg %p61
        %p501 = pneg %p85
        %p502 = pneg %p82
        %p503 = scmp.lt.s32.totalorder %s27, 1
        %s504 = scalar_select %p503, %s27, 1
        %s505 = scalar_lea.vmem %s3, %s504
        %p506 = pneg %p111
        %p507 = pneg %p108
        %p508 = scmp.lt.s32.totalorder %s27, 1
        %s509 = scalar_select %p508, %s27, 1
        %s510 = scalar_lea.vmem %s4, %s509
        %p511 = pneg %p137
        %p512 = pneg %p134
        %p513 = scmp.lt.s32.totalorder %s27, 1
        %s514 = scalar_select %p513, %s27, 1
        %s515 = smul.addr %s514, 4
        %s516 = smul.addr %s515, 4
        %s517 = scalar_lea.vmem %s5, %s516
        %p518 = pneg %p163
        %p519 = pneg %p160
        %p520 = scmp.lt.s32.totalorder %s27, 1
        %s521 = scalar_select %p520, %s27, 1
        %s522 = scalar_lea.vmem %s6, %s521
        %p523 = pneg %p189
        %p524 = pneg %p186
        %p525 = scmp.lt.s32.totalorder %s27, 1
        %s526 = scalar_select %p525, %s27, 1
        %s527 = smul.addr %s526, 8
        %s528 = smul.addr %s527, 4
        %s529 = scalar_lea.vmem %s7, %s528
        %p530 = pneg %p215
        %p531 = pneg %p212
        %p532 = scmp.lt.s32.totalorder %s27, 1
        %s533 = scalar_select %p532, %s27, 1
        %s534 = scalar_lea.vmem %s8, %s533
        %p535 = pneg %p241
        %p536 = pneg %p238
        %p537 = scmp.lt.s32.totalorder %s27, 1
        %s538 = scalar_select %p537, %s27, 1
        %s539 = scalar_lea.vmem %s9, %s538
        %p540 = pneg %p267
        %p541 = pneg %p264
        %p542 = scmp.lt.s32.totalorder %s27, 1
        %s543 = scalar_select %p542, %s27, 1
        %s544 = scalar_lea.vmem %s10, %s543
        %p545 = pneg %p293
        %p546 = pneg %p290
        %p547 = pneg %p314
        %p548 = pneg %p311
        %p549 = pneg %p335
        %p550 = pneg %p332
        %p551 = pneg %p356
        %p552 = pneg %p353
        %p553 = pneg %p377
        %p554 = pneg %p374
        %p555 = pneg %p398
        %p556 = pneg %p395
        %p557 = scmp.lt.s32.totalorder %s27, 1
        %s558 = scalar_select %p557, %s27, 1
        %s559 = scalar_lea.vmem %s3, %s558
        %p560 = scmp.lt.s32.totalorder %s27, 1
        %s561 = scalar_select %p560, %s27, 1
        %s562 = scalar_lea.vmem %s4, %s561
        %p563 = scmp.lt.s32.totalorder %s27, 1
        %s564 = scalar_select %p563, %s27, 1
        %s565 = smul.addr %s564, 4
        %s566 = smul.addr %s565, 4
        %s567 = scalar_lea.vmem %s5, %s566
        %p568 = scmp.lt.s32.totalorder %s27, 1
        %s569 = scalar_select %p568, %s27, 1
        %s570 = scalar_lea.vmem %s6, %s569
        %p571 = scmp.lt.s32.totalorder %s27, 1
        %s572 = scalar_select %p571, %s27, 1
        %s573 = smul.addr %s572, 8
        %s574 = smul.addr %s573, 4
        %s575 = scalar_lea.vmem %s7, %s574
        %p576 = scmp.lt.s32.totalorder %s27, 1
        %s577 = scalar_select %p576, %s27, 1
        %s578 = scalar_lea.vmem %s8, %s577
        %p579 = scmp.lt.s32.totalorder %s27, 1
        %s580 = scalar_select %p579, %s27, 1
        %s581 = scalar_lea.vmem %s9, %s580
        %p582 = scmp.lt.s32.totalorder %s27, 1
        %s583 = scalar_select %p582, %s27, 1
        %s584 = scalar_lea.vmem %s10, %s583
        %p586 = scmp.eq.s32.totalorder %s27, 0
        // Predicated region
        $region81: #{classifier_forward.1} parent=79 // pred_check
          %p587 = pneg %p586
        $region82: #{classifier_forward.1} parent=79 // pred_check_branch
          %589 = sbr.rel (%p587) target = $region84
        $region83: #{classifier_forward.1} parent=79 // pred_region
          %v590 = vld [vmem:[%s0] sm:$0xff]
          %v591 = vld [vmem:[%s0 + $0x8] sm:$0xff]
          %vm592 = vcmask 261120
          %593 = vst.msk [vmem:[#allocation2] sm:$0xff] %vm592, %v590
          %594 = vst.msk [vmem:[#allocation2 + $0x8] sm:$0xff] %vm592, %v591
        $region84: #{classifier_forward.1} parent=79 // pred_fallthru
          _
        %v595 = vld [vmem:[#allocation2] sm:$0xff]
        %v596 = vld [vmem:[#allocation2 + $0x8] sm:$0xff]
        %v597 = vpack.c.bf16 %v596, %v595
        %v598 = vld [vmem:[%s1] sm:$0xf]
        %v599 = vld [vmem:[%s1 + $0x4] sm:$0xf]
        %v600 = vld [vmem:[%s1 + $0x8] sm:$0xf]
        %v601 = vld [vmem:[%s1 + $0xc] sm:$0xf]
        %v606 = vunpack.c.l.b16 %v598
        %v607 = vunpack.c.l.b16 %v599
        %v608 = vunpack.c.l.b16 %v600
        %v609 = vunpack.c.l.b16 %v601
        %v610 = vpack.c.b16 %v607, %v606
        %v611 = vpack.c.b16 %v609, %v608
        %vm614 = vcmask 261120
        %v616 = vsel %vm614, %v597, 0
        %618 = vmatprep.subr.bf16.mxu0 0
        %619 = vmatpush1.bf16.msra.mxu0 %v610
        %620 = vmatprep.subr.bf16.mxu0 0
        %621 = vmatpush1.bf16.msra.mxu0 %v611
        %622 = vmatprep.subr.bf16.mxu0 0
        %623 = vmatpush1.bf16.msra.mxu0 0
        %624 = vmatprep.subr.bf16.mxu0 0
        %625 = vmatpush1.bf16.msra.mxu0 0
        %626 = vmatprep.subr.bf16.mxu0 0
        %627 = vmatpush1.bf16.msra.mxu0 0
        %628 = vmatprep.subr.bf16.mxu0 0
        %629 = vmatpush1.bf16.msra.mxu0 0
        %630 = vmatprep.subr.bf16.mxu0 0
        %631 = vmatpush1.bf16.msra.mxu0 0
        %632 = vmatprep.subr.bf16.mxu0 0
        %633 = vmatpush1.bf16.msra.mxu0 0
        %634 = vmatprep.subr.bf16.mxu0 0
        %635 = vmatpush1.bf16.msra.mxu0 0
        %636 = vmatprep.subr.bf16.mxu0 0
        %637 = vmatpush1.bf16.msra.mxu0 0
        %638 = vmatprep.subr.bf16.mxu0 0
        %639 = vmatpush1.bf16.msra.mxu0 0
        %640 = vmatprep.subr.bf16.mxu0 0
        %641 = vmatpush1.bf16.msra.mxu0 0
        %642 = vmatprep.subr.bf16.mxu0 0
        %643 = vmatpush1.bf16.msra.mxu0 0
        %644 = vmatprep.subr.bf16.mxu0 0
        %645 = vmatpush1.bf16.msra.mxu0 0
        %646 = vmatprep.subr.bf16.mxu0 0
        %647 = vmatpush1.bf16.msra.mxu0 0
        %648 = vmatprep.subr.bf16.mxu0 0
        %649 = vmatpush1.bf16.msra.mxu0 0
        %650 = vmatprep.mubr.bf16.mxu0 0
        %651 = vmatmul.mubr.bf16.gmra.mrb[0].mxu0 %v616
        %v652 = vpop.f32.mrb[0].mxu0
        %v653 = vadd.f32 0.0, %v652
        %v654 = vpop.f32.mrb[0].mxu0
        %v655 = vpop.f32.mrb[0].mxu0
        %v656 = vadd.f32 0.0, %v655
        %v657 = vpop.f32.mrb[0].mxu0
        %658 = vdwg.mxu0
        %661 = vrot.lane.b32.xlu0 %v653, 96
        %v662 = vpop.permute.xlu0 %661
        %663 = vrot.lane.b32.xlu0 %v656, 96
        %v664 = vpop.permute.xlu0 %663
        %v667 = vld [vmem:[%s2] sm:$0xf]
        %v668 = vpack.c.bf16 %v662, %v653
        %v669 = vpack.c.bf16 %v664, %v656
        %670 = vxpose.xlu0.c.b16.start [1/8] %v668, 128
        %671 = vxpose.xlu0.c.b16.cont [2/8] 0, 128
        %672 = vxpose.xlu0.c.b16.cont [3/8] 0, 128
        %673 = vxpose.xlu0.c.b16.cont [4/8] 0, 128
        %674 = vxpose.xlu0.c.b16.cont [5/8] 0, 128
        %675 = vxpose.xlu0.c.b16.cont [6/8] 0, 128
        %676 = vxpose.xlu0.c.b16.cont [7/8] 0, 128
        %677 = vxpose.xlu0.c.b16.end [8/8] 0, 128
        %v678 = vpop.trf.xlu0
        %v679 = vpop.trf.xlu0
        %v680 = vpop.trf.xlu0
        %v681 = vpop.trf.xlu0
        %v682 = vpop.trf.xlu0
        %v683 = vpop.trf.xlu0
        %v684 = vpop.trf.xlu0
        %v685 = vpop.trf.xlu0
        %686 = vxpose.xlu0.c.b16.start [1/8] %v669, 128
        %687 = vxpose.xlu0.c.b16.cont [2/8] 0, 128
        %688 = vxpose.xlu0.c.b16.cont [3/8] 0, 128
        %689 = vxpose.xlu0.c.b16.cont [4/8] 0, 128
        %690 = vxpose.xlu0.c.b16.cont [5/8] 0, 128
        %691 = vxpose.xlu0.c.b16.cont [6/8] 0, 128
        %692 = vxpose.xlu0.c.b16.cont [7/8] 0, 128
        %693 = vxpose.xlu0.c.b16.end [8/8] 0, 128
        %v694 = vpop.trf.xlu0
        %v695 = vpop.trf.xlu0
        %v696 = vpop.trf.xlu0
        %v697 = vpop.trf.xlu0
        %v698 = vpop.trf.xlu0
        %v699 = vpop.trf.xlu0
        %v700 = vpop.trf.xlu0
        %v701 = vpop.trf.xlu0
        %vm702 = vcmask 130048
        %v704 = vsel %vm702, %v678, 0
        %v707 = vsel %vm702, %v679, 0
        %v710 = vsel %vm702, %v694, 0
        %v713 = vsel %vm702, %v695, 0
        %v716 = vsel %vm702, %v667, 0
        %718 = vmatprep.subr.bf16.mxu0 0
        %719 = vmatpush1.bf16.xpose.msra.mxu0 %v716
        %720 = vmatprep.subr.bf16.mxu0 0
        %721 = vmatpush1.bf16.xpose.msra.mxu0 0
        %722 = vmatprep.subr.bf16.mxu0 0
        %723 = vmatpush1.bf16.xpose.msra.mxu0 0
        %724 = vmatprep.subr.bf16.mxu0 0
        %725 = vmatpush1.bf16.xpose.msra.mxu0 0
        %726 = vmatprep.subr.bf16.mxu0 0
        %727 = vmatpush1.bf16.xpose.msra.mxu0 0
        %728 = vmatprep.subr.bf16.mxu0 0
        %729 = vmatpush1.bf16.xpose.msra.mxu0 0
        %730 = vmatprep.subr.bf16.mxu0 0
        %731 = vmatpush1.bf16.xpose.msra.mxu0 0
        %732 = vmatprep.subr.bf16.mxu0 0
        %733 = vmatpush1.bf16.xpose.msra.mxu0 0
        %734 = vmatprep.subr.bf16.mxu0 0
        %735 = vmatpush1.bf16.xpose.msra.mxu0 0
        %736 = vmatprep.subr.bf16.mxu0 0
        %737 = vmatpush1.bf16.xpose.msra.mxu0 0
        %738 = vmatprep.subr.bf16.mxu0 0
        %739 = vmatpush1.bf16.xpose.msra.mxu0 0
        %740 = vmatprep.subr.bf16.mxu0 0
        %741 = vmatpush1.bf16.xpose.msra.mxu0 0
        %742 = vmatprep.subr.bf16.mxu0 0
        %743 = vmatpush1.bf16.xpose.msra.mxu0 0
        %744 = vmatprep.subr.bf16.mxu0 0
        %745 = vmatpush1.bf16.xpose.msra.mxu0 0
        %746 = vmatprep.subr.bf16.mxu0 0
        %747 = vmatpush1.bf16.xpose.msra.mxu0 0
        %748 = vmatprep.subr.bf16.mxu0 0
        %749 = vmatpush1.bf16.xpose.msra.mxu0 0
        %750 = vmatprep.mubr.bf16.mxu0 0
        %751 = vmatmul.mubr.bf16.gmra.mrb[0].mxu0 %v704
        %v752 = vpop.f32.mrb[0].mxu0
        %v753 = vadd.f32 0.0, %v752
        %v754 = vpop.f32.mrb[0].mxu0
        %v755 = vpop.f32.mrb[0].mxu0
        %v756 = vadd.f32 0.0, %v755
        %v757 = vpop.f32.mrb[0].mxu0
        %758 = vmatprep.mubr.bf16.mxu0 0
        %759 = vmatmul.mubr.bf16.gmra.mrb[0].mxu0 %v707
        %v760 = vpop.f32.mrb[0].mxu0
        %v761 = vadd.f32 0.0, %v760
        %v762 = vpop.f32.mrb[0].mxu0
        %v763 = vpop.f32.mrb[0].mxu0
        %v764 = vadd.f32 0.0, %v763
        %v765 = vpop.f32.mrb[0].mxu0
        %766 = vmatprep.mubr.bf16.mxu0 0
        %767 = vmatmul.mubr.bf16.gmra.mrb[0].mxu0 %v710
        %v768 = vpop.f32.mrb[0].mxu0
        %v769 = vadd.f32 0.0, %v768
        %v770 = vpop.f32.mrb[0].mxu0
        %v771 = vpop.f32.mrb[0].mxu0
        %v772 = vadd.f32 0.0, %v771
        %v773 = vpop.f32.mrb[0].mxu0
        %774 = vmatprep.mubr.bf16.mxu0 0
        %775 = vmatmul.mubr.bf16.gmra.mrb[0].mxu0 %v713
        %v776 = vpop.f32.mrb[0].mxu0
        %v777 = vadd.f32 0.0, %v776
        %v778 = vpop.f32.mrb[0].mxu0
        %v779 = vpop.f32.mrb[0].mxu0
        %v780 = vadd.f32 0.0, %v779
        %v781 = vpop.f32.mrb[0].mxu0
        %782 = vdwg.mxu0
        %783 = vxpose.xlu0.b32.start [1/16] %v753, 128
        %784 = vxpose.xlu0.b32.cont [2/16] %v756, 128
        %785 = vxpose.xlu0.b32.cont [3/16] %v761, 128
        %786 = vxpose.xlu0.b32.cont [4/16] %v764, 128
        %787 = vxpose.xlu0.b32.cont [5/16] 0.0, 128
        %788 = vxpose.xlu0.b32.cont [6/16] 0.0, 128
        %789 = vxpose.xlu0.b32.cont [7/16] 0.0, 128
        %790 = vxpose.xlu0.b32.cont [8/16] 0.0, 128
        %791 = vxpose.xlu0.b32.cont [9/16] 0.0, 128
        %792 = vxpose.xlu0.b32.cont [10/16] 0.0, 128
        %793 = vxpose.xlu0.b32.cont [11/16] 0.0, 128
        %794 = vxpose.xlu0.b32.cont [12/16] 0.0, 128
        %795 = vxpose.xlu0.b32.cont [13/16] 0.0, 128
        %796 = vxpose.xlu0.b32.cont [14/16] 0.0, 128
        %797 = vxpose.xlu0.b32.cont [15/16] 0.0, 128
        %798 = vxpose.xlu0.b32.end [16/16] 0.0, 128
        %v799 = vpop.trf.xlu0
        %v800 = vpop.trf.xlu0
        %v801 = vpop.trf.xlu0
        %v802 = vpop.trf.xlu0
        %v803 = vpop.trf.xlu0
        %v804 = vpop.trf.xlu0
        %v805 = vpop.trf.xlu0
        %v806 = vpop.trf.xlu0
        %v807 = vpop.trf.xlu0
        %v808 = vpop.trf.xlu0
        %v809 = vpop.trf.xlu0
        %v810 = vpop.trf.xlu0
        %v811 = vpop.trf.xlu0
        %v812 = vpop.trf.xlu0
        %v813 = vpop.trf.xlu0
        %v814 = vpop.trf.xlu0
        %815 = vxpose.xlu0.b32.start [1/16] %v769, 128
        %816 = vxpose.xlu0.b32.cont [2/16] %v772, 128
        %817 = vxpose.xlu0.b32.cont [3/16] %v777, 128
        %818 = vxpose.xlu0.b32.cont [4/16] %v780, 128
        %819 = vxpose.xlu0.b32.cont [5/16] 0.0, 128
        %820 = vxpose.xlu0.b32.cont [6/16] 0.0, 128
        %821 = vxpose.xlu0.b32.cont [7/16] 0.0, 128
        %822 = vxpose.xlu0.b32.cont [8/16] 0.0, 128
        %823 = vxpose.xlu0.b32.cont [9/16] 0.0, 128
        %824 = vxpose.xlu0.b32.cont [10/16] 0.0, 128
        %825 = vxpose.xlu0.b32.cont [11/16] 0.0, 128
        %826 = vxpose.xlu0.b32.cont [12/16] 0.0, 128
        %827 = vxpose.xlu0.b32.cont [13/16] 0.0, 128
        %828 = vxpose.xlu0.b32.cont [14/16] 0.0, 128
        %829 = vxpose.xlu0.b32.cont [15/16] 0.0, 128
        %830 = vxpose.xlu0.b32.end [16/16] 0.0, 128
        %v831 = vpop.trf.xlu0
        %v832 = vpop.trf.xlu0
        %v833 = vpop.trf.xlu0
        %v834 = vpop.trf.xlu0
        %v835 = vpop.trf.xlu0
        %v836 = vpop.trf.xlu0
        %v837 = vpop.trf.xlu0
        %v838 = vpop.trf.xlu0
        %v839 = vpop.trf.xlu0
        %v840 = vpop.trf.xlu0
        %v841 = vpop.trf.xlu0
        %v842 = vpop.trf.xlu0
        %v843 = vpop.trf.xlu0
        %v844 = vpop.trf.xlu0
        %v845 = vpop.trf.xlu0
        %v846 = vpop.trf.xlu0
        %v847 = vadd.f32 %v595, %v799
        %v848 = vadd.f32 %v596, %v831
        %v849 = vld [vmem:[%s559] sm:$0x1]
        %v850 = vld [vmem:[%s562] sm:$0x1]
        %v851 = vsel %vm614, %v847, 0.0
        %852 = vadd.xlane.f32.xlu0 %v851
        %v853 = vpop.xlane.xlu0 %852
        %v854 = vsel %vm614, %v848, 0.0
        %855 = vadd.xlane.f32.xlu0 %v854
        %v856 = vpop.xlane.xlu0 %855
        %v857 = vrcp.pop 32.0
        %v858 = vmul.f32 %v853, %v857
        %v859 = vmul.f32 %v856, %v857
        %v860 = vsub.f32 %v847, %v858
        %v861 = vsub.f32 %v848, %v859
        %v862 = vmul.f32 %v860, %v860
        %v863 = vmul.f32 %v861, %v861
        %v864 = vsel %vm614, %v862, 0.0
        %865 = vadd.xlane.f32.xlu0 %v864
        %v866 = vpop.xlane.xlu0 %865
        %v867 = vsel %vm614, %v863, 0.0
        %868 = vadd.xlane.f32.xlu0 %v867
        %v869 = vpop.xlane.xlu0 %868
        %v870 = vmul.f32 %v866, %v857
        %v871 = vmul.f32 %v869, %v857
        %v872 = vadd.f32 %v870, 1e-12
        %v873 = vadd.f32 %v871, 1e-12
        %v874 = vrsqrt.pop %v872
        %v875 = vrsqrt.pop %v873
        %v876 = vmul.f32 %v860, %v874
        %v877 = vmul.f32 %v861, %v875
        %v879 = vlaneseq
        %v880 = vshrl.u32 %v879, 7
        %v881 = vsub.s32 0, %v880
        %v882 = vrot.slane %v849, %v881
        %v884 = vmul.f32 %v876, %v882
        %v885 = vmul.f32 %v877, %v882
        %v887 = vlaneseq
        %v888 = vshrl.u32 %v887, 7
        %v889 = vsub.s32 0, %v888
        %v890 = vrot.slane %v850, %v889
        %v892 = vadd.f32 %v884, %v890
        %v893 = vadd.f32 %v885, %v890
        %v894 = vpack.c.bf16 %v893, %v892
        %v895 = vld [vmem:[%s567] sm:$0xf]
        %v896 = vld [vmem:[%s567 + $0x4] sm:$0xf]
        %v897 = vld [vmem:[%s567 + $0x8] sm:$0xf]
        %v898 = vld [vmem:[%s567 + $0xc] sm:$0xf]
        %v899 = vld [vmem:[%s570] sm:$0x1]
        %v901 = vlaneseq
        %v902 = vshrl.u32 %v901, 7
        %v903 = vsub.s32 0, %v902
        %v904 = vrot.slane %v899, %v903
        %v910 = vunpack.c.l.b16 %v895
        %v911 = vunpack.c.l.b16 %v896
        %v912 = vunpack.c.l.b16 %v897
        %v913 = vunpack.c.l.b16 %v898
        %v914 = vpack.c.b16 %v911, %v910
        %v915 = vpack.c.b16 %v913, %v912
        %v919 = vsel %vm614, %v894, 0
        %921 = vmatprep.subr.bf16.mxu0 0
        %922 = vmatpush1.bf16.msra.mxu0 %v914
        %923 = vmatprep.subr.bf16.mxu0 0
        %924 = vmatpush1.bf16.msra.mxu0 %v915
        %925 = vmatprep.subr.bf16.mxu0 0
        %926 = vmatpush1.bf16.msra.mxu0 0
        %927 = vmatprep.subr.bf16.mxu0 0
        %928 = vmatpush1.bf16.msra.mxu0 0
        %929 = vmatprep.subr.bf16.mxu0 0
        %930 = vmatpush1.bf16.msra.mxu0 0
        %931 = vmatprep.subr.bf16.mxu0 0
        %932 = vmatpush1.bf16.msra.mxu0 0
        %933 = vmatprep.subr.bf16.mxu0 0
        %934 = vmatpush1.bf16.msra.mxu0 0
        %935 = vmatprep.subr.bf16.mxu0 0
        %936 = vmatpush1.bf16.msra.mxu0 0
        %937 = vmatprep.subr.bf16.mxu0 0
        %938 = vmatpush1.bf16.msra.mxu0 0
        %939 = vmatprep.subr.bf16.mxu0 0
        %940 = vmatpush1.bf16.msra.mxu0 0
        %941 = vmatprep.subr.bf16.mxu0 0
        %942 = vmatpush1.bf16.msra.mxu0 0
        %943 = vmatprep.subr.bf16.mxu0 0
        %944 = vmatpush1.bf16.msra.mxu0 0
        %945 = vmatprep.subr.bf16.mxu0 0
        %946 = vmatpush1.bf16.msra.mxu0 0
        %947 = vmatprep.subr.bf16.mxu0 0
        %948 = vmatpush1.bf16.msra.mxu0 0
        %949 = vmatprep.subr.bf16.mxu0 0
        %950 = vmatpush1.bf16.msra.mxu0 0
        %951 = vmatprep.subr.bf16.mxu0 0
        %952 = vmatpush1.bf16.msra.mxu0 0
        %953 = vmatprep.mubr.bf16.mxu0 0
        %954 = vmatmul.mubr.bf16.gmra.mrb[0].mxu0 %v919
        %v955 = vpop.f32.mrb[0].mxu0
        %v956 = vadd.f32 %v904, %v955
        %v957 = vpop.f32.mrb[0].mxu0
        %v958 = vpop.f32.mrb[0].mxu0
        %v959 = vadd.f32 %v904, %v958
        %v960 = vpop.f32.mrb[0].mxu0
        %961 = vdwg.mxu0
        %v962 = vmul.f32 %v956, 0.5
        %v963 = vmul.f32 %v959, 0.5
        %v964 = vmul.f32 %v956, 0.044715
        %v965 = vmul.f32 %v959, 0.044715
        %v966 = vmul.f32 %v964, %v956
        %v967 = vmul.f32 %v965, %v959
        %v968 = vmul.f32 %v966, %v956
        %v969 = vmul.f32 %v967, %v959
        %v970 = vadd.f32 %v956, %v968
        %v971 = vadd.f32 %v959, %v969
        %v972 = vmul.f32 %v970, 0.7978846
        %v973 = vmul.f32 %v971, 0.7978846
        %v974 = vtanh.pop %v972
        %v975 = vtanh.pop %v973
        %v976 = vadd.f32 %v974, 1.0
        %v977 = vadd.f32 %v975, 1.0
        %v978 = vmul.f32 %v962, %v976
        %v979 = vmul.f32 %v963, %v977
        %v980 = vpack.c.bf16 %v979, %v978
        %v981 = vld [vmem:[%s575] sm:$0xf]
        %v982 = vld [vmem:[%s575 + $0x4] sm:$0xf]
        %v983 = vld [vmem:[%s575 + $0x8] sm:$0xf]
        %v984 = vld [vmem:[%s575 + $0xc] sm:$0xf]
        %v985 = vld [vmem:[%s575 + $0x10] sm:$0xf]
        %v986 = vld [vmem:[%s575 + $0x14] sm:$0xf]
        %v987 = vld [vmem:[%s575 + $0x18] sm:$0xf]
        %v988 = vld [vmem:[%s575 + $0x1c] sm:$0xf]
        %v989 = vld [vmem:[%s578] sm:$0x1]
        %v991 = vlaneseq
        %v992 = vshrl.u32 %v991, 7
        %v993 = vsub.s32 0, %v992
        %v994 = vrot.slane %v989, %v993
        %v1004 = vunpack.c.l.b16 %v981
        %v1005 = vunpack.c.l.b16 %v982
        %v1006 = vunpack.c.l.b16 %v983
        %v1007 = vunpack.c.l.b16 %v984
        %v1008 = vunpack.c.l.b16 %v985
        %v1009 = vunpack.c.l.b16 %v986
        %v1010 = vunpack.c.l.b16 %v987
        %v1011 = vunpack.c.l.b16 %v988
        %v1012 = vpack.c.b16 %v1005, %v1004
        %v1013 = vpack.c.b16 %v1007, %v1006
        %v1014 = vpack.c.b16 %v1009, %v1008
        %v1015 = vpack.c.b16 %v1011, %v1010
        %vm1020 = vcmask 523264
        %v1022 = vsel %vm1020, %v980, 0
        %1024 = vmatprep.subr.bf16.mxu0 0
        %1025 = vmatpush1.bf16.msra.mxu0 %v1012
        %1026 = vmatprep.subr.bf16.mxu0 0
        %1027 = vmatpush1.bf16.msra.mxu0 %v1013
        %1028 = vmatprep.subr.bf16.mxu0 0
        %1029 = vmatpush1.bf16.msra.mxu0 %v1014
        %1030 = vmatprep.subr.bf16.mxu0 0
        %1031 = vmatpush1.bf16.msra.mxu0 %v1015
        %1032 = vmatprep.subr.bf16.mxu0 0
        %1033 = vmatpush1.bf16.msra.mxu0 0
        %1034 = vmatprep.subr.bf16.mxu0 0
        %1035 = vmatpush1.bf16.msra.mxu0 0
        %1036 = vmatprep.subr.bf16.mxu0 0
        %1037 = vmatpush1.bf16.msra.mxu0 0
        %1038 = vmatprep.subr.bf16.mxu0 0
        %1039 = vmatpush1.bf16.msra.mxu0 0
        %1040 = vmatprep.subr.bf16.mxu0 0
        %1041 = vmatpush1.bf16.msra.mxu0 0
        %1042 = vmatprep.subr.bf16.mxu0 0
        %1043 = vmatpush1.bf16.msra.mxu0 0
        %1044 = vmatprep.subr.bf16.mxu0 0
        %1045 = vmatpush1.bf16.msra.mxu0 0
        %1046 = vmatprep.subr.bf16.mxu0 0
        %1047 = vmatpush1.bf16.msra.mxu0 0
        %1048 = vmatprep.subr.bf16.mxu0 0
        %1049 = vmatpush1.bf16.msra.mxu0 0
        %1050 = vmatprep.subr.bf16.mxu0 0
        %1051 = vmatpush1.bf16.msra.mxu0 0
        %1052 = vmatprep.subr.bf16.mxu0 0
        %1053 = vmatpush1.bf16.msra.mxu0 0
        %1054 = vmatprep.subr.bf16.mxu0 0
        %1055 = vmatpush1.bf16.msra.mxu0 0
        %1056 = vmatprep.mubr.bf16.mxu0 0
        %1057 = vmatmul.mubr.bf16.gmra.mrb[0].mxu0 %v1022
        %v1058 = vpop.f32.mrb[0].mxu0
        %v1059 = vadd.f32 %v994, %v1058
        %v1060 = vpop.f32.mrb[0].mxu0
        %v1061 = vpop.f32.mrb[0].mxu0
        %v1062 = vadd.f32 %v994, %v1061
        %v1063 = vpop.f32.mrb[0].mxu0
        %1064 = vdwg.mxu0
        %v1065 = vadd.f32 %v892, %v1059
        %v1066 = vadd.f32 %v893, %v1062
        %v1067 = vld [vmem:[%s581] sm:$0x1]
        %v1068 = vld [vmem:[%s584] sm:$0x1]
        %v1069 = vsel %vm614, %v1065, 0.0
        %1070 = vadd.xlane.f32.xlu0 %v1069
        %v1071 = vpop.xlane.xlu0 %1070
        %v1072 = vsel %vm614, %v1066, 0.0
        %1073 = vadd.xlane.f32.xlu0 %v1072
        %v1074 = vpop.xlane.xlu0 %1073
        %v1075 = vmul.f32 %v1071, %v857
        %v1076 = vmul.f32 %v1074, %v857
        %v1077 = vsub.f32 %v1065, %v1075
        %v1078 = vsub.f32 %v1066, %v1076
        %v1079 = vmul.f32 %v1077, %v1077
        %v1080 = vmul.f32 %v1078, %v1078
        %v1081 = vsel %vm614, %v1079, 0.0
        %1082 = vadd.xlane.f32.xlu0 %v1081
        %v1083 = vpop.xlane.xlu0 %1082
        %v1084 = vsel %vm614, %v1080, 0.0
        %1085 = vadd.xlane.f32.xlu0 %v1084
        %v1086 = vpop.xlane.xlu0 %1085
        %v1087 = vmul.f32 %v1083, %v857
        %v1088 = vmul.f32 %v1086, %v857
        %v1089 = vadd.f32 %v1087, 1e-12
        %v1090 = vadd.f32 %v1088, 1e-12
        %v1091 = vrsqrt.pop %v1089
        %v1092 = vrsqrt.pop %v1090
        %v1093 = vmul.f32 %v1077, %v1091
        %v1094 = vmul.f32 %v1078, %v1092
        %v1096 = vlaneseq
        %v1097 = vshrl.u32 %v1096, 7
        %v1098 = vsub.s32 0, %v1097
        %v1099 = vrot.slane %v1067, %v1098
        %v1101 = vmul.f32 %v1093, %v1099
        %v1102 = vmul.f32 %v1094, %v1099
        %v1104 = vlaneseq
        %v1105 = vshrl.u32 %v1104, 7
        %v1106 = vsub.s32 0, %v1105
        %v1107 = vrot.slane %v1068, %v1106
        %v1109 = vadd.f32 %v1101, %v1107
        %v1110 = vadd.f32 %v1102, %v1107
        %1111 = vst.msk [vmem:[#allocation2] sm:$0xff] %vm614, %v1109
        %1112 = vst.msk [vmem:[#allocation2 + $0x8] sm:$0xff] %vm614, %v1110
        %p1113 = scmp.eq.s32.totalorder %s27, 1
        // Predicated region
        $region85: #{classifier_forward.1} parent=79 // pred_check
          %p1114 = pneg %p1113
        $region86: #{classifier_forward.1} parent=79 // pred_check_branch
          %1116 = sbr.rel (%p1114) target = $region88
        $region87: #{classifier_forward.1} parent=79 // pred_region
          %v1117 = vsel %vm614, %v1109, -inf
          %v1118 = vrot.slane %v1117, 4
          %v1119 = vmax.f32 %v1117, %v1118
          %v1120 = vrot.slane %v1119, 2
          %v1121 = vmax.f32 %v1119, %v1120
          %v1122 = vrot.slane %v1121, 1
          %v1123 = vmax.f32 %v1121, %v1122
          %v1124 = vsel %vm614, %v1110, -inf
          %v1125 = vrot.slane %v1124, 4
          %v1126 = vmax.f32 %v1124, %v1125
          %v1127 = vrot.slane %v1126, 2
          %v1128 = vmax.f32 %v1126, %v1127
          %v1129 = vrot.slane %v1128, 1
          %v1130 = vmax.f32 %v1128, %v1129
          %v1131 = vpack.c.bf16 %v1123, %v1123
          %v1132 = vpack.c.bf16 %v1130, %v1130
          %v1133 = vld [vmem:[%s11] sm:$0xf]
          %v1134 = vld [vmem:[%s11 + $0x4] sm:$0xf]
          %v1135 = vld [vmem:[%s11 + $0x8] sm:$0xf]
          %v1136 = vld [vmem:[%s11 + $0xc] sm:$0xf]
          %v1137 = vld [vmem:[%s12] sm:$0x1]
          %v1139 = vlaneseq
          %v1140 = vshrl.u32 %v1139, 7
          %v1141 = vsub.s32 0, %v1140
          %v1142 = vrot.slane %v1137, %v1141
          %v1146 = vunpack.c.l.b16 %v1131
          %v1147 = vunpack.c.l.b16 %v1132
          %vm1148 = vcmask 1041409
          %v1149 = vsel %vm1148, %v1147, %v1146
          %v1150 = vpack.c.b16 %v1149, %v1149
          %v1155 = vunpack.c.l.b16 %v1133
          %v1156 = vunpack.c.l.b16 %v1134
          %v1157 = vunpack.c.l.b16 %v1135
          %v1158 = vunpack.c.l.b16 %v1136
          %v1159 = vpack.c.b16 %v1156, %v1155
          %v1160 = vpack.c.b16 %v1158, %v1157
          %v1164 = vsel %vm614, %v1150, 0
          %1166 = vmatprep.subr.bf16.mxu0 0
          %1167 = vmatpush1.bf16.msra.mxu0 %v1159
          %1168 = vmatprep.subr.bf16.mxu0 0
          %1169 = vmatpush1.bf16.msra.mxu0 %v1160
          %1170 = vmatprep.subr.bf16.mxu0 0
          %1171 = vmatpush1.bf16.msra.mxu0 0
          %1172 = vmatprep.subr.bf16.mxu0 0
          %1173 = vmatpush1.bf16.msra.mxu0 0
          %1174 = vmatprep.subr.bf16.mxu0 0
          %1175 = vmatpush1.bf16.msra.mxu0 0
          %1176 = vmatprep.subr.bf16.mxu0 0
          %1177 = vmatpush1.bf16.msra.mxu0 0
          %1178 = vmatprep.subr.bf16.mxu0 0
          %1179 = vmatpush1.bf16.msra.mxu0 0
          %1180 = vmatprep.subr.bf16.mxu0 0
          %1181 = vmatpush1.bf16.msra.mxu0 0
          %1182 = vmatprep.subr.bf16.mxu0 0
          %1183 = vmatpush1.bf16.msra.mxu0 0
          %1184 = vmatprep.subr.bf16.mxu0 0
          %1185 = vmatpush1.bf16.msra.mxu0 0
          %1186 = vmatprep.subr.bf16.mxu0 0
          %1187 = vmatpush1.bf16.msra.mxu0 0
          %1188 = vmatprep.subr.bf16.mxu0 0
          %1189 = vmatpush1.bf16.msra.mxu0 0
          %1190 = vmatprep.subr.bf16.mxu0 0
          %1191 = vmatpush1.bf16.msra.mxu0 0
          %1192 = vmatprep.subr.bf16.mxu0 0
          %1193 = vmatpush1.bf16.msra.mxu0 0
          %1194 = vmatprep.subr.bf16.mxu0 0
          %1195 = vmatpush1.bf16.msra.mxu0 0
          %1196 = vmatprep.subr.bf16.mxu0 0
          %1197 = vmatpush1.bf16.msra.mxu0 0
          %1198 = vmatprep.mubr.bf16.mxu0 0
          %1199 = vmatmul.mubr.bf16.gmra.mrb[0].mxu0 %v1164
          %v1200 = vpop.f32.mrb[0].mxu0
          %v1201 = vadd.f32 %v1142, %v1200
          %v1202 = vpop.f32.mrb[0].mxu0
          %v1203 = vpop.f32.mrb[0].mxu0
          %v1204 = vpop.f32.mrb[0].mxu0
          %1205 = vdwg.mxu0
          %v1206 = vmax.f32 %v1201, 0.0
          %v1207 = vpack.c.bf16 %v1206, %v1206
          %v1208 = vld [vmem:[%s13] sm:$0xf]
          %v1209 = vld [vmem:[%s13 + $0x4] sm:$0xf]
          %v1210 = vld [vmem:[%s13 + $0x8] sm:$0xf]
          %v1211 = vld [vmem:[%s13 + $0xc] sm:$0xf]
          %v1212 = vld [vmem:[%s14] sm:$0x1]
          %v1214 = vlaneseq
          %v1215 = vshrl.u32 %v1214, 7
          %v1216 = vsub.s32 0, %v1215
          %v1217 = vrot.slane %v1212, %v1216
          %v1223 = vunpack.c.l.b16 %v1208
          %v1224 = vunpack.c.l.b16 %v1209
          %v1225 = vunpack.c.l.b16 %v1210
          %v1226 = vunpack.c.l.b16 %v1211
          %v1227 = vpack.c.b16 %v1224, %v1223
          %v1228 = vpack.c.b16 %v1226, %v1225
          %v1232 = vsel %vm614, %v1207, 0
          %1234 = vmatprep.subr.bf16.mxu0 0
          %1235 = vmatpush1.bf16.msra.mxu0 %v1227
          %1236 = vmatprep.subr.bf16.mxu0 0
          %1237 = vmatpush1.bf16.msra.mxu0 %v1228
          %1238 = vmatprep.subr.bf16.mxu0 0
          %1239 = vmatpush1.bf16.msra.mxu0 0
          %1240 = vmatprep.subr.bf16.mxu0 0
          %1241 = vmatpush1.bf16.msra.mxu0 0
          %1242 = vmatprep.subr.bf16.mxu0 0
          %1243 = vmatpush1.bf16.msra.mxu0 0
          %1244 = vmatprep.subr.bf16.mxu0 0
          %1245 = vmatpush1.bf16.msra.mxu0 0
          %1246 = vmatprep.subr.bf16.mxu0 0
          %1247 = vmatpush1.bf16.msra.mxu0 0
          %1248 = vmatprep.subr.bf16.mxu0 0
          %1249 = vmatpush1.bf16.msra.mxu0 0
          %1250 = vmatprep.subr.bf16.mxu0 0
          %1251 = vmatpush1.bf16.msra.mxu0 0
          %1252 = vmatprep.subr.bf16.mxu0 0
          %1253 = vmatpush1.bf16.msra.mxu0 0
          %1254 = vmatprep.subr.bf16.mxu0 0
          %1255 = vmatpush1.bf16.msra.mxu0 0
          %1256 = vmatprep.subr.bf16.mxu0 0
          %1257 = vmatpush1.bf16.msra.mxu0 0
          %1258 = vmatprep.subr.bf16.mxu0 0
          %1259 = vmatpush1.bf16.msra.mxu0 0
          %1260 = vmatprep.subr.bf16.mxu0 0
          %1261 = vmatpush1.bf16.msra.mxu0 0
          %1262 = vmatprep.subr.bf16.mxu0 0
          %1263 = vmatpush1.bf16.msra.mxu0 0
          %1264 = vmatprep.subr.bf16.mxu0 0
          %1265 = vmatpush1.bf16.msra.mxu0 0
          %1266 = vmatprep.mubr.bf16.mxu0 0
          %1267 = vmatmul.mubr.bf16.gmra.mrb[0].mxu0 %v1232
          %v1268 = vpop.f32.mrb[0].mxu0
          %v1269 = vadd.f32 %v1217, %v1268
          %v1270 = vpop.f32.mrb[0].mxu0
          %v1271 = vpop.f32.mrb[0].mxu0
          %v1272 = vpop.f32.mrb[0].mxu0
          %1273 = vdwg.mxu0
          %1274 = vst [vmem:[#allocation3] sm:$0x3] %v1269
        $region88: #{classifier_forward.1} parent=79 // pred_fallthru
          _
        // Predicated region
        $region89: #{classifier_forward.1} parent=79 // pred_check
          %p1275 = pneg %p395
        $region90: #{classifier_forward.1} parent=79 // pred_check_branch
          %1277 = sbr.rel (%p1275) target = $region92
        $region91: #{classifier_forward.1} parent=79 // pred_region
          %s1279 = ssub.s32 32, 32
          %1280 = vsyncadd [#allocation4], %s1279
          %s1282 = sshll.u32 [#allocation3], 4
          %s1283 = int_to_ptr.vmem [resolvable:$true] %s1282
          %1285 = dma.vmem_to_hbm [thread:$0]  %s1283, 32, %s15, [#allocation4]
        $region92: #{classifier_forward.1} parent=79 // pred_fallthru
          _
        // Predicated region
        $region93: #{classifier_forward.1} parent=79 // pred_check
          %p1286 = pneg %p395
        $region94: #{classifier_forward.1} parent=79 // pred_check_branch
          %1288 = sbr.rel (%p1286) target = $region96
        $region95: #{classifier_forward.1} parent=79 // pred_region
          %1289 = dma.done [#allocation4], 32
        $region96: #{classifier_forward.1} parent=79 // pred_fallthru
          _
      $region80: #{classifier_forward.1} parent=5 // pred_fallthru
        _
      %p1290 = scmp.le.s32.totalorder 2, %s22
      // Predicated region
      $region97: #{classifier_forward.1} parent=5 // pred_check
        %p1291 = pneg %p1290
      $region98: #{classifier_forward.1} parent=5 // pred_check_branch
        %1293 = sbr.rel (%p1291) target = $region100
      $region99: #{classifier_forward.1} parent=5 // pred_region
        %s1294 = ssub.s32 %s22, 2
      $region100: #{classifier_forward.1} parent=5 // pred_fallthru
        _
    $region6: #{classifier_forward.1} parent=1 // loop_footer
      %s26 = sadd.s32 1, %s22
    $region7: #{classifier_forward.1} parent=1 // loop_footer_branch
      %21 = sbr.rel target = $region3
    $region8: #{classifier_forward.1} parent=1 // loop_exit
      _
    %1295 = vsyncpa [#allocation4], 1
    %s1296 = scalar_lea.sflag [#allocation4], 1
    %1297 = vsyncpa %s1296, 1

</llo_original>
